<compile_context>
chip_gen: v7x
topology: tpu7x:2x2x1
jax: 0.10.0
libtpu: 0.0.40
codegen_flags: <defaults>
</compile_context>

<pallas_src>
import math

import jax
import jax.numpy as jnp
from jax.experimental import pallas as pl
from jax.experimental.pallas import tpu as pltpu


# ----------------------------------------------------------------------------
# VMEM budgeting helpers (generation aware: 128 MiB v5e/v6e, 64 MiB v7x)
# ----------------------------------------------------------------------------
def _vmem_capacity_bytes():
    try:
        cap = int(pltpu.get_tpu_info().vmem_capacity_bytes)
        if cap > 0:
            return cap
    except Exception:
        pass
    return 64 * 1024 * 1024          # conservative default (v7x per-core)


def _vmem_limit_bytes():
    # Explicit scoped-VMEM limit: half of physical, capped at 64 MiB.
    return int(min(_vmem_capacity_bytes() // 2, 64 * 1024 * 1024))


def _round_up(x, m):
    return ((x + m - 1) // m) * m


def _choose_row_tile(M, Ks, Cout, in_itemsizes, out_itemsize):
    """Largest bf16-friendly row tile whose pipelined working set fits VMEM."""
    budget = int(0.75 * _vmem_limit_bytes())
    # Constant-index weight/bias blocks are still double-buffered by the pipeline.
    fixed = 2 * (sum(K * Cout * 2 for K in Ks) + Cout * 4)
    fit = 16
    for cand in (16, 32, 64, 128, 256, 512, 1024, 2048, 4096):
        per_step = 2 * (sum(cand * K * ib for K, ib in zip(Ks, in_itemsizes))
                        + cand * Cout * out_itemsize)
        if per_step + fixed <= budget:
            fit = cand
    fit = max(16, min(fit, _round_up(M, 16)))
    # Prefer a tile that divides M exactly (no row padding) with >= 2 grid steps.
    tm = fit
    while tm > 16 and not (M % tm == 0 and M // tm >= 2):
        tm //= 2
    tm = max(16, (tm // 16) * 16)
    if M % tm != 0:
        tm = fit                      # fall back: pad rows up to a multiple of fit
    return tm, _round_up(M, tm)


# ----------------------------------------------------------------------------
# Pallas kernel: fused multi-input matmul -> +bias -> SiLU
# (the channel concat of the branches is fused as a sum of per-branch dots)
# ----------------------------------------------------------------------------
def _make_fused_matmul_kernel(n_in):
    def kernel(*refs):
        x_refs = refs[:n_in]
        w_refs = refs[n_in:2 * n_in]
        b_ref = refs[2 * n_in]
        o_ref = refs[2 * n_in + 1]
        # activations are cast to bf16 in-register (no extra HBM cast pass)
        acc = jnp.dot(x_refs[0][...].astype(jnp.bfloat16), w_refs[0][...],
                      preferred_element_type=jnp.float32)
        for j in range(1, n_in):
            acc = acc + jnp.dot(x_refs[j][...].astype(jnp.bfloat16), w_refs[j][...],
                                preferred_element_type=jnp.float32)
        y = acc + b_ref[...]              # BN affine (scale pre-folded into w)
        y = y * jax.nn.sigmoid(y)         # SiLU, f32 epilogue
        o_ref[...] = y.astype(o_ref.dtype)
    return kernel


def fused_matmul_bn_silu(xs, ws, bias, out_dtype=jnp.float32, num_rows=None):
    """Fused 1x1 Conv + BN + SiLU over a (virtual) channel-concat of branches.

    xs: list of (>=M, K_i) activations (only the first `num_rows` rows matter);
    ws: list of (K_i, Cout) weight chunks (BN scale folded in);
    bias: (Cout,) folded BN bias.  Returns (M, Cout) in out_dtype.
    """
    n_in = len(xs)
    assert n_in == len(ws) and n_in >= 1
    M = int(num_rows) if num_rows is not None else int(xs[0].shape[0])
    Ks = [int(x.shape[1]) for x in xs]
    Cout = int(ws[0].shape[1])
    in_itemsizes = [jnp.dtype(x.dtype).itemsize for x in xs]
    out_itemsize = jnp.dtype(out_dtype).itemsize

    ws = [w.astype(jnp.bfloat16) for w in ws]            # bf16 MXU weights
    bias2 = jnp.asarray(bias, jnp.float32).reshape(1, Cout)

    tm, M_pad = _choose_row_tile(M, Ks, Cout, in_itemsizes, out_itemsize)
    xs = [jnp.pad(x, ((0, M_pad - x.shape[0]), (0, 0))) if x.shape[0] < M_pad else x
          for x in xs]

    grid = (M_pad // tm,)
    x_specs = [pl.BlockSpec((tm, K), lambda i: (i, 0)) for K in Ks]
    w_specs = [pl.BlockSpec((K, Cout), lambda i: (0, 0)) for K in Ks]
    b_spec = pl.BlockSpec((1, Cout), lambda i: (0, 0))
    o_spec = pl.BlockSpec((tm, Cout), lambda i: (i, 0))

    cost = pl.CostEstimate(
        flops=int(2 * M_pad * sum(Ks) * Cout),
        transcendentals=int(M_pad * Cout),
        bytes_accessed=int(sum(M_pad * K * ib for K, ib in zip(Ks, in_itemsizes))
                           + (M_pad // tm) * (sum(K * Cout * 2 for K in Ks) + Cout * 4)
                           + M_pad * Cout * out_itemsize),
    )

    out = pl.pallas_call(
        _make_fused_matmul_kernel(n_in),
        out_shape=jax.ShapeDtypeStruct((M_pad, Cout), out_dtype),
        grid=grid,
        in_specs=x_specs + w_specs + [b_spec],
        out_specs=o_spec,
        compiler_params=pltpu.CompilerParams(
            dimension_semantics=("parallel",),
            vmem_limit_bytes=_vmem_limit_bytes()),
        cost_estimate=cost,
    )(*xs, *ws, bias2)
    return out[:M]


# ----------------------------------------------------------------------------
# Pallas kernel: k x k max pool, stride 1, SAME padding
# (halo built in VMEM; separable W-then-H shifted max; f32 math, bf16 stores)
# ----------------------------------------------------------------------------
_NEG_LARGE = -3.0e38   # finite "minus infinity" sentinel (representable in bf16)


def _make_maxpool_kernel(k, H, W):
    p = k // 2

    def kernel(x_ref, o_ref):
        x = x_ref[0].astype(jnp.float32)                  # (H, W, Ct)
        Ct = x.shape[-1]
        # W direction (in-kernel SAME halo, no HBM pad pass)
        padw = jnp.full((H, p, Ct), _NEG_LARGE, jnp.float32)
        xw = jnp.concatenate([padw, x, padw], axis=1)     # (H, W + 2p, Ct)
        t = xw[:, 0:W, :]
        for dx in range(1, k):
            t = jnp.maximum(t, xw[:, dx:dx + W, :])
        # H direction
        padh = jnp.full((p, W, Ct), _NEG_LARGE, jnp.float32)
        tp = jnp.concatenate([padh, t, padh], axis=0)     # (H + 2p, W, Ct)
        r = tp[0:H, :, :]
        for dy in range(1, k):
            r = jnp.maximum(r, tp[dy:dy + H, :, :])
        o_ref[0] = r.astype(o_ref.dtype)
    return kernel


def _choose_pool_ctile(Cp, H, W, itemsize):
    """Channel tile: multiple of 128, divides Cp, double-buffered block <= ~2 MB."""
    ct = 128
    limit = 2 * 1024 * 1024
    while (ct * 2 <= Cp and Cp % (ct * 2) == 0
           and 2 * H * W * (ct * 2) * itemsize <= limit):
        ct *= 2
    return ct


def maxpool2d_same_branch(t_img, branch, n_per_branch, k, ct):
    """SAME max pool of branch `branch` of the stacked cv1 output.

    t_img: (num_branches * N, H, W, Cp) bf16; returns (N, H, W, Cp) bf16.
    """
    _, H, W, Cp = t_img.shape
    N = n_per_branch
    return pl.pallas_call(
        _make_maxpool_kernel(k, H, W),
        out_shape=jax.ShapeDtypeStruct((N, H, W, Cp), t_img.dtype),
        grid=(N, Cp // ct),
        in_specs=[pl.BlockSpec((1, H, W, ct),
                               lambda n, c, b=branch, nn=N: (b * nn + n, 0, 0, c))],
        out_specs=pl.BlockSpec((1, H, W, ct), lambda n, c: (n, 0, 0, c)),
        compiler_params=pltpu.CompilerParams(
            dimension_semantics=("parallel", "parallel"),
            vmem_limit_bytes=_vmem_limit_bytes()),
    )(t_img)


# ----------------------------------------------------------------------------
# Parameter construction (deterministic, synthetic; eval-mode BN -> scale/bias)
# ----------------------------------------------------------------------------
def _conv1x1_bn_params(key, cin, cout):
    kw, kg, kb = jax.random.split(key, 3)
    w = jax.random.normal(kw, (cin, cout), jnp.float32) / math.sqrt(cin)
    gamma = 1.0 + 0.1 * jax.random.normal(kg, (cout,), jnp.float32)
    beta = 0.1 * jax.random.normal(kb, (cout,), jnp.float32)
    mean = jnp.zeros((cout,), jnp.float32)
    var = jnp.ones((cout,), jnp.float32)
    eps = 1e-5
    scale = gamma / jnp.sqrt(var + eps)
    bias = beta - mean * scale
    return {"w": w, "scale": scale.reshape(1, cout), "bias": bias.reshape(1, cout)}


def make_concat_spp_params(key, c1, c2, k=(5, 9, 13)):
    c_hidden = c1 // 2
    k1, k2 = jax.random.split(key)
    return {
        "c_hidden": c_hidden,
        "c2": c2,
        "k": tuple(k),
        "cv1": _conv1x1_bn_params(k1, c1, c_hidden),
        "cv2": _conv1x1_bn_params(k2, c_hidden * (len(k) + 1), c2),
    }


# ----------------------------------------------------------------------------
# ConcatSPP forward (Pallas path)
# ----------------------------------------------------------------------------
def concat_spp_forward(input_list, params):
    ks = params["k"]
    c_h = params["c_hidden"]
    c2 = params["c2"]
    nb = len(ks)
    assert len(input_list) >= nb

    xs_nhwc = [jnp.transpose(x, (0, 2, 3, 1)) for x in input_list[:nb]]
    N, H, W, C1 = xs_nhwc[0].shape
    M = N * H * W

    # Lane-dense channel counts (padded with zero weights / zero bias).
    c_h_pad = _round_up(c_h, 128)
    c2_pad = _round_up(c2, 128)

    # --- cv1 on all (identity-op) inputs in ONE launch (rows stacked) ---
    w1 = params["cv1"]["w"] * params["cv1"]["scale"]          # (C1, c_h), BN folded
    b1 = params["cv1"]["bias"].reshape(-1)
    w1p = jnp.pad(w1, ((0, 0), (0, c_h_pad - c_h)))
    b1p = jnp.pad(b1, (0, c_h_pad - c_h))
    x_all = jnp.concatenate([x.reshape(M, C1) for x in xs_nhwc], axis=0)  # (nb*M, C1)
    t_all = fused_matmul_bn_silu([x_all], [w1p], b1p,
                                 out_dtype=jnp.bfloat16)      # (nb*M, c_h_pad) bf16

    # --- SPP max pools (bf16 blocks, channel-tiled grid, in-kernel halo) ---
    t_img = t_all.reshape(nb * N, H, W, c_h_pad)
    ct = _choose_pool_ctile(c_h_pad, H, W, 2)
    branches = [t_all]      # branch 0 == t0 (rows [0, M) of the stacked output)
    for bi, kk in enumerate(ks):
        pooled = maxpool2d_same_branch(t_img, bi, N, kk, ct)
        branches.append(pooled.reshape(M, c_h_pad))

    # --- cv2: the channel concat is fused as per-branch weight chunks ---
    w2 = params["cv2"]["w"] * params["cv2"]["scale"]          # (c_h*(nb+1), c2)
    b2 = params["cv2"]["bias"].reshape(-1)
    w_chunks = [jnp.pad(w2[i * c_h:(i + 1) * c_h, :],
                        ((0, c_h_pad - c_h), (0, c2_pad - c2)))
                for i in range(nb + 1)]
    b2p = jnp.pad(b2, (0, c2_pad - c2))
    out = fused_matmul_bn_silu(branches, w_chunks, b2p,
                               out_dtype=jnp.float32, num_rows=M)  # (M, c2_pad)

    out = out[:, :c2]
    return jnp.transpose(out.reshape(N, H, W, c2), (0, 3, 1, 2))


# ----------------------------------------------------------------------------
# Pure-JAX reference (f32) for the correctness check
# ----------------------------------------------------------------------------
def _ref_conv1x1_bn_silu(x_nhwc, p):
    y = jnp.einsum("nhwc,co->nhwo", x_nhwc, p["w"])
    y = y * p["scale"].reshape(1, 1, 1, -1) + p["bias"].reshape(1, 1, 1, -1)
    return y * jax.nn.sigmoid(y)


def _ref_maxpool(x_nhwc, k):
    p = k // 2
    return jax.lax.reduce_window(
        x_nhwc, -jnp.inf, jax.lax.max,
        window_dimensions=(1, k, k, 1), window_strides=(1, 1, 1, 1),
        padding=((0, 0), (p, p), (p, p), (0, 0)))


def concat_spp_forward_ref(input_list, params):
    ks = params["k"]
    xs = [jnp.transpose(x, (0, 2, 3, 1)) for x in input_list[:len(ks)]]
    ts = [_ref_conv1x1_bn_silu(x, params["cv1"]) for x in xs]
    outs = [ts[0]] + [_ref_maxpool(t, kk) for kk, t in zip(ks, ts)]
    cat = jnp.concatenate(outs, axis=-1)
    y = _ref_conv1x1_bn_silu(cat, params["cv2"])
    return jnp.transpose(y, (0, 3, 1, 2))


# ----------------------------------------------------------------------------
if __name__ == "__main__":
    key = jax.random.PRNGKey(0)
    kx, kp = jax.random.split(key)

    N, C1, H, W = 2, 4, 16, 16
    C2 = 8
    POOL_K = (5, 9, 13)

    kxs = jax.random.split(kx, len(POOL_K))
    input_list = [jax.random.normal(kxs[i], (N, C1, H, W), jnp.float32)
                  for i in range(len(POOL_K))]
    params = make_concat_spp_params(kp, C1, C2, k=POOL_K)

    out = jax.block_until_ready(concat_spp_forward(input_list, params))
    ref = jax.block_until_ready(concat_spp_forward_ref(input_list, params))

    assert out.shape == (N, C2, H, W), out.shape
    max_err = float(jnp.max(jnp.abs(out - ref)))
    ref_mag = float(jnp.max(jnp.abs(ref)))
    tol = 2e-2 + 3e-2 * ref_mag        # bf16 operands + bf16 intermediates vs f32 ref
    if max_err > tol:
        raise AssertionError(f"Pallas ConcatSPP mismatch: max_err={max_err}, tol={tol}")
    print("KERNEL_OK")
</pallas_src>

<mosaic_0001>
module attributes {stable_mosaic.version = 11 : i64} {
  func.func @kernel(%arg0: i32, %arg1: memref<768x4xf32, #tpu.memory_space<vmem>>, %arg2: memref<4x128xbf16, #tpu.memory_space<vmem>>, %arg3: memref<1x128xf32, #tpu.memory_space<vmem>>, %arg4: memref<768x128xbf16, #tpu.memory_space<vmem>>) attributes {dimension_semantics = [#tpu.dimension_semantics<parallel>], iteration_bounds = array<i64: 2>, scalar_prefetch = 0 : i64, scratch_operands = 0 : i64, tpu.core_type = #tpu.core_type<tc>, window_params = [{transform_indices = @transform_0, window_bounds = array<i64: 768, 4>}, {pipeline_mode = #tpu.pipeline_mode<synchronous>, transform_indices = @transform_1, window_bounds = array<i64: 4, 128>}, {pipeline_mode = #tpu.pipeline_mode<synchronous>, transform_indices = @transform_2, window_bounds = array<i64: 1, 128>}, {transform_indices = @transform_3, window_bounds = array<i64: 768, 128>}]} {
    %c0 = arith.constant 0 : index
    %c0_0 = arith.constant 0 : index
    %0 = vector.load %arg1[%c0, %c0_0] : memref<768x4xf32, #tpu.memory_space<vmem>>, vector<768x4xf32>
    %1 = arith.truncf %0 : vector<768x4xf32> to vector<768x4xbf16>
    %c0_1 = arith.constant 0 : index
    %c0_2 = arith.constant 0 : index
    %2 = vector.load %arg2[%c0_1, %c0_2] : memref<4x128xbf16, #tpu.memory_space<vmem>>, vector<4x128xbf16>
    %cst = arith.constant dense<0.000000e+00> : vector<768x128xf32>
    %3 = tpu.matmul %1, %2, %cst {dimension_numbers = #tpu.dot_dimension_numbers<[1], [0], [0], [1], [0, 0, 1, 1], [], []>} : vector<768x4xbf16>, vector<4x128xbf16>, vector<768x128xf32> -> vector<768x128xf32>
    %c0_3 = arith.constant 0 : index
    %c0_4 = arith.constant 0 : index
    %4 = vector.load %arg3[%c0_3, %c0_4] : memref<1x128xf32, #tpu.memory_space<vmem>>, vector<1x128xf32>
    %5 = vector.broadcast %4 : vector<1x128xf32> to vector<768x128xf32>
    %6 = arith.addf %3, %5 : vector<768x128xf32>
    %7 = arith.negf %6 : vector<768x128xf32>
    %8 = math.exp %7 : vector<768x128xf32>
    %cst_5 = arith.constant 1.000000e+00 : f32
    %9 = vector.broadcast %cst_5 : f32 to vector<768x128xf32>
    %10 = arith.addf %9, %8 : vector<768x128xf32>
    %11 = arith.divf %9, %10 : vector<768x128xf32>
    %12 = arith.mulf %6, %11 : vector<768x128xf32>
    %13 = arith.truncf %12 : vector<768x128xf32> to vector<768x128xbf16>
    %c0_6 = arith.constant 0 : index
    %c0_7 = arith.constant 0 : index
    %14 = vector.load %arg4[%c0_6, %c0_7] : memref<768x128xbf16, #tpu.memory_space<vmem>>, vector<768x128xbf16>
    tpu.vector_store %arg4[%c0_6, %c0_7], %13 {strides = array<i32>} : memref<768x128xbf16, #tpu.memory_space<vmem>>, vector<768x128xbf16>,
    return
  }
  func.func @transform_0(%arg0: i32) -> (i32, i32) {
    %c0_i32 = arith.constant 0 : i32
    %c0_i32_0 = arith.constant 0 : i32
    return %arg0, %c0_i32 : i32, i32
  }
  func.func @transform_1(%arg0: i32) -> (i32, i32) {
    %c0_i32 = arith.constant 0 : i32
    %c0_i32_0 = arith.constant 0 : i32
    %c0_i32_1 = arith.constant 0 : i32
    return %c0_i32, %c0_i32_0 : i32, i32
  }
  func.func @transform_2(%arg0: i32) -> (i32, i32) {
    %c0_i32 = arith.constant 0 : i32
    %c0_i32_0 = arith.constant 0 : i32
    %c0_i32_1 = arith.constant 0 : i32
    return %c0_i32, %c0_i32_0 : i32, i32
  }
  func.func @transform_3(%arg0: i32) -> (i32, i32) {
    %c0_i32 = arith.constant 0 : i32
    %c0_i32_0 = arith.constant 0 : i32
    return %arg0, %c0_i32 : i32, i32
  }
}

</mosaic_0001>

<llo_original>
// kernel: tpu_custom_call.1
$region0: #{tpu_custom_call.1}
  #allocation0 [shape = 'u32[]', space=smem, size = 0x4, offset = 0x4, fixed_abs, tag = 'smem constant byte address 0x4 - core index']
  #allocation1 [shape = 'u32[144,128]{1,0:T(1,128)}', space=vmem, size = 0x12000, scoped, tag = 'internal scratch']
  %s0 = inlined_call_operand.vmem [shape: f32[1536,4], index: 0, kind: input, shape index: {}]
  %s1 = inlined_call_operand.vmem [shape: bf16[4,128], index: 1, kind: input, shape index: {}]
  %s2 = inlined_call_operand.vmem [shape: f32[1,128], index: 2, kind: input, shape index: {}]
  %s3 = inlined_call_operand.hbm [shape: bf16[1536,128], index: 3, kind: output, shape index: {}]
  %s4 = sld [smem:[#allocation0]]
  $region45: #{tpu_custom_call.1} parent=0
    _
  %s6 = ssub.s32 1, %s4
  %s7 = scalar_select 0, %s6, %s4
  $region1: #{tpu_custom_call.1} parent=0
    #allocation2 [shape = 'u8[393216]{0}', space=vmem, size = 0x60000, scoped, tag = 'output window, operand 0']
    #allocation3 [shape = 's32[2]{0}', space=sflag, size = 0x8, scoped, tag = 'scoped memory for tpu_custom_call.1']
    %8 = vsyncpa [#allocation3], 0
    %s9 = scalar_lea.sflag [#allocation3], 1
    %10 = vsyncpa %s9, 0
    loop: start=0, step=1, limit=4
    $region2: #{tpu_custom_call.1} parent=1 // loop_pre_header
      _
    $region3: #{tpu_custom_call.1} parent=1 // loop_header
      %s12 = sphi 0, %s16
      %p13 = scmp.ge.s32.totalorder %s12, 4
      %s22 = sphi 0, %s24
      %s25 = sphi 0, %s22
      %s26 = sphi 0, %s25
      %s42 = sphi 0, %s26
      %s46 = sphi 0, %s46
      %s48 = sphi 0, %s46
      %s49 = sphi 0, %s48
      %s63 = sphi 0, %s49
      %s67 = sphi 0, %s67
      %s69 = sphi 0, %s67
      %s70 = sphi 0, %s69
      %s84 = sphi 0, %s70
      %s90 = sphi 0, %s92
      %s93 = sphi 0, %s90
      %s94 = sphi 0, %s93
      %s110 = sphi 0, %s94
    $region4: #{tpu_custom_call.1} parent=1 // loop_header_branch
      %15 = sbr.rel (%p13) target = $region8
    $region5: #{tpu_custom_call.1} parent=1 // loop_body
      %s17 = ssub.s32 %s12, 1
      %s18 = ssub.s32 %s12, 2
      %s19 = sadd.s32 %s12, 1
      %s20 = ssub.s32 %s12, %s19
      %p21 = scmp.eq.s32.totalorder %s20, 0
      %s23 = sadd.s32 %s22, 1
      %s24 = scalar_select %p21, %s22, %s23
      %p27 = pneg %p21
      %p28 = scmp.eq.s32.totalorder %s12, 1
      %p29 = por %p27, %p28
      %p30 = scmp.ne.s32.totalorder %s22, %s25
      %p31 = scmp.eq.s32.totalorder %s12, 0
      %p32 = por %p30, %p31
      %p33 = scmp.ne.s32.totalorder %s22, %s25
      %p34 = scmp.eq.s32.totalorder %s17, 1
      %p35 = por %p33, %p34
      %p36 = scmp.ne.s32.totalorder %s25, %s26
      %p37 = scmp.eq.s32.totalorder %s17, 0
      %p38 = por %p36, %p37
      %p39 = scmp.ne.s32.totalorder %s25, %s26
      %p40 = scmp.eq.s32.totalorder %s18, 1
      %p41 = por %p39, %p40
      %p43 = scmp.ne.s32.totalorder %s26, %s42
      %p44 = scmp.eq.s32.totalorder %s18, 0
      %p45 = por %p43, %p44
      %s47 = sadd.s32 %s46, 1
      %p50 = scmp.eq.s32.totalorder %s12, 1
      %p51 = scmp.ne.s32.totalorder %s46, %s48
      %p52 = scmp.eq.s32.totalorder %s12, 0
      %p53 = por %p51, %p52
      %p54 = scmp.ne.s32.totalorder %s46, %s48
      %p55 = scmp.eq.s32.totalorder %s17, 1
      %p56 = por %p54, %p55
      %p57 = scmp.ne.s32.totalorder %s48, %s49
      %p58 = scmp.eq.s32.totalorder %s17, 0
      %p59 = por %p57, %p58
      %p60 = scmp.ne.s32.totalorder %s48, %s49
      %p61 = scmp.eq.s32.totalorder %s18, 1
      %p62 = por %p60, %p61
      %p64 = scmp.ne.s32.totalorder %s49, %s63
      %p65 = scmp.eq.s32.totalorder %s18, 0
      %p66 = por %p64, %p65
      %s68 = sadd.s32 %s67, 1
      %p71 = scmp.eq.s32.totalorder %s12, 1
      %p72 = scmp.ne.s32.totalorder %s67, %s69
      %p73 = scmp.eq.s32.totalorder %s12, 0
      %p74 = por %p72, %p73
      %p75 = scmp.ne.s32.totalorder %s67, %s69
      %p76 = scmp.eq.s32.totalorder %s17, 1
      %p77 = por %p75, %p76
      %p78 = scmp.ne.s32.totalorder %s69, %s70
      %p79 = scmp.eq.s32.totalorder %s17, 0
      %p80 = por %p78, %p79
      %p81 = scmp.ne.s32.totalorder %s69, %s70
      %p82 = scmp.eq.s32.totalorder %s18, 1
      %p83 = por %p81, %p82
      %p85 = scmp.ne.s32.totalorder %s70, %s84
      %p86 = scmp.eq.s32.totalorder %s18, 0
      %p87 = por %p85, %p86
      %s88 = ssub.s32 %s12, %s19
      %p89 = scmp.eq.s32.totalorder %s88, 0
      %s91 = sadd.s32 %s90, 1
      %s92 = scalar_select %p89, %s90, %s91
      %p95 = pneg %p89
      %p96 = scmp.eq.s32.totalorder %s12, 1
      %p97 = por %p95, %p96
      %p98 = scmp.ne.s32.totalorder %s90, %s93
      %p99 = scmp.eq.s32.totalorder %s12, 0
      %p100 = por %p98, %p99
      %p101 = scmp.ne.s32.totalorder %s90, %s93
      %p102 = scmp.eq.s32.totalorder %s17, 1
      %p103 = por %p101, %p102
      %p104 = scmp.ne.s32.totalorder %s93, %s94
      %p105 = scmp.eq.s32.totalorder %s17, 0
      %p106 = por %p104, %p105
      %p107 = scmp.ne.s32.totalorder %s93, %s94
      %p108 = scmp.eq.s32.totalorder %s18, 1
      %p109 = por %p107, %p108
      %p111 = scmp.ne.s32.totalorder %s94, %s110
      %p112 = scmp.eq.s32.totalorder %s18, 0
      %p113 = por %p111, %p112
      %p114 = scmp.le.s32.totalorder 1, %s12
      %p115 = scmp.lt.s32.totalorder %s12, 3
      %p116 = pnand %p114, %p115
      %p117 = pneg %p116
      // Predicated region
      $region9: #{tpu_custom_call.1} parent=5 // pred_check
        _
      $region10: #{tpu_custom_call.1} parent=5 // pred_check_branch
        %119 = sbr.rel (%p116) target = $region12
      $region11: #{tpu_custom_call.1} parent=5 // pred_region
        %s120 = ssub.s32 %s12, 1
        // Predicated region
        $region13: #{tpu_custom_call.1} parent=11 // pred_check
          %p121 = pneg %p59
        $region14: #{tpu_custom_call.1} parent=11 // pred_check_branch
          %123 = sbr.rel (%p121) target = $region16
        $region15: #{tpu_custom_call.1} parent=11 // pred_region
          _
        $region16: #{tpu_custom_call.1} parent=11 // pred_fallthru
          _
        // Predicated region
        $region17: #{tpu_custom_call.1} parent=11 // pred_check
          %p124 = pneg %p80
        $region18: #{tpu_custom_call.1} parent=11 // pred_check_branch
          %126 = sbr.rel (%p124) target = $region20
        $region19: #{tpu_custom_call.1} parent=11 // pred_region
          _
        $region20: #{tpu_custom_call.1} parent=11 // pred_fallthru
          _
      $region12: #{tpu_custom_call.1} parent=5 // pred_fallthru
        _
      %p127 = scmp.lt.s32.totalorder %s12, 2
      // Predicated region
      $region21: #{tpu_custom_call.1} parent=5 // pred_check
        %p128 = pneg %p127
      $region22: #{tpu_custom_call.1} parent=5 // pred_check_branch
        %130 = sbr.rel (%p128) target = $region24
      $region23: #{tpu_custom_call.1} parent=5 // pred_region
        // Predicated region
        $region25: #{tpu_custom_call.1} parent=23 // pred_check
          %p131 = pneg %p32
        $region26: #{tpu_custom_call.1} parent=23 // pred_check_branch
          %133 = sbr.rel (%p131) target = $region28
        $region27: #{tpu_custom_call.1} parent=23 // pred_region
          %s134 = smul.u32 96, %s12
          %p135 = scmp.lt.s32.totalorder %s134, 191
          %s136 = scalar_select %p135, %s134, 191
          %s137 = smul.addr %s136, 8
          %s138 = scalar_lea.vmem %s0, %s137
          %s139 = smul.u32 96, %s12
        $region28: #{tpu_custom_call.1} parent=23 // pred_fallthru
          _
      $region24: #{tpu_custom_call.1} parent=5 // pred_fallthru
        _
      %p140 = scmp.le.s32.totalorder 1, %s12
      %p141 = scmp.lt.s32.totalorder %s12, 3
      %p142 = pnand %p140, %p141
      %p143 = pneg %p142
      // Predicated region
      $region29: #{tpu_custom_call.1} parent=5 // pred_check
        _
      $region30: #{tpu_custom_call.1} parent=5 // pred_check_branch
        %145 = sbr.rel (%p142) target = $region32
      $region31: #{tpu_custom_call.1} parent=5 // pred_region
        %s146 = ssub.s32 %s12, 1
        %s147 = smul.u32 96, %s17
        %p148 = scmp.lt.s32.totalorder %s147, 191
        %s149 = scalar_select %p148, %s147, 191
        %s150 = smul.addr %s149, 8
        %s151 = scalar_lea.vmem %s0, %s150
        %p152 = pneg %p38
        %p153 = pneg %p35
        %p154 = pneg %p59
        %p155 = pneg %p56
        %p156 = pneg %p80
        %p157 = pneg %p77
        %p158 = pneg %p106
        %p159 = pneg %p103
        %s160 = sand.u32 %s93, 1
        %s161 = scalar_lea.sflag [#allocation3], %s160
        %s162 = sand.u32 %s93, 1
        %s163 = smul.addr %s162, 384
        %s164 = scalar_lea.vmem [#allocation2], %s163
        %s165 = smul.u32 96, %s17
        %p166 = scmp.lt.s32.totalorder %s165, 191
        %s167 = scalar_select %p166, %s165, 191
        %s168 = smul.addr %s167, 8
        %s169 = scalar_lea.vmem %s0, %s168
        %s170 = smul.u32 96, %s17
        %s171 = smul.u32 96, %s17
        %v173 = vld [vmem:[%s169] sm:$0xff]
        %v174 = vld [vmem:[%s169 + $0x8] sm:$0xff]
        %v175 = vld [vmem:[%s169 + $0x10] sm:$0xff]
        %v176 = vld [vmem:[%s169 + $0x18] sm:$0xff]
        %v177 = vld [vmem:[%s169 + $0x20] sm:$0xff]
        %v178 = vld [vmem:[%s169 + $0x28] sm:$0xff]
        %v179 = vld [vmem:[%s169 + $0x30] sm:$0xff]
        %v180 = vld [vmem:[%s169 + $0x38] sm:$0xff]
        %v181 = vld [vmem:[%s169 + $0x40] sm:$0xff]
        %v182 = vld [vmem:[%s169 + $0x48] sm:$0xff]
        %v183 = vld [vmem:[%s169 + $0x50] sm:$0xff]
        %v184 = vld [vmem:[%s169 + $0x58] sm:$0xff]
        %v185 = vld [vmem:[%s169 + $0x60] sm:$0xff]
        %v186 = vld [vmem:[%s169 + $0x68] sm:$0xff]
        %v187 = vld [vmem:[%s169 + $0x70] sm:$0xff]
        %v188 = vld [vmem:[%s169 + $0x78] sm:$0xff]
        %v189 = vld [vmem:[%s169 + $0x80] sm:$0xff]
        %v190 = vld [vmem:[%s169 + $0x88] sm:$0xff]
        %v191 = vld [vmem:[%s169 + $0x90] sm:$0xff]
        %v192 = vld [vmem:[%s169 + $0x98] sm:$0xff]
        %v193 = vld [vmem:[%s169 + $0xa0] sm:$0xff]
        %v194 = vld [vmem:[%s169 + $0xa8] sm:$0xff]
        %v195 = vld [vmem:[%s169 + $0xb0] sm:$0xff]
        %v196 = vld [vmem:[%s169 + $0xb8] sm:$0xff]
        %v197 = vld [vmem:[%s169 + $0xc0] sm:$0xff]
        %v198 = vld [vmem:[%s169 + $0xc8] sm:$0xff]
        %v199 = vld [vmem:[%s169 + $0xd0] sm:$0xff]
        %v200 = vld [vmem:[%s169 + $0xd8] sm:$0xff]
        %v201 = vld [vmem:[%s169 + $0xe0] sm:$0xff]
        %v202 = vld [vmem:[%s169 + $0xe8] sm:$0xff]
        %v203 = vld [vmem:[%s169 + $0xf0] sm:$0xff]
        %v204 = vld [vmem:[%s169 + $0xf8] sm:$0xff]
        %v205 = vld [vmem:[%s169 + $0x100] sm:$0xff]
        %v206 = vld [vmem:[%s169 + $0x108] sm:$0xff]
        %v207 = vld [vmem:[%s169 + $0x110] sm:$0xff]
        %v208 = vld [vmem:[%s169 + $0x118] sm:$0xff]
        %v209 = vld [vmem:[%s169 + $0x120] sm:$0xff]
        %v210 = vld [vmem:[%s169 + $0x128] sm:$0xff]
        %v211 = vld [vmem:[%s169 + $0x130] sm:$0xff]
        %v212 = vld [vmem:[%s169 + $0x138] sm:$0xff]
        %v213 = vld [vmem:[%s169 + $0x140] sm:$0xff]
        %v214 = vld [vmem:[%s169 + $0x148] sm:$0xff]
        %v215 = vld [vmem:[%s169 + $0x150] sm:$0xff]
        %v216 = vld [vmem:[%s169 + $0x158] sm:$0xff]
        %v217 = vld [vmem:[%s169 + $0x160] sm:$0xff]
        %v218 = vld [vmem:[%s169 + $0x168] sm:$0xff]
        %v219 = vld [vmem:[%s169 + $0x170] sm:$0xff]
        %v220 = vld [vmem:[%s169 + $0x178] sm:$0xff]
        %v221 = vld [vmem:[%s169 + $0x180] sm:$0xff]
        %v222 = vld [vmem:[%s169 + $0x188] sm:$0xff]
        %v223 = vld [vmem:[%s169 + $0x190] sm:$0xff]
        %v224 = vld [vmem:[%s169 + $0x198] sm:$0xff]
        %v225 = vld [vmem:[%s169 + $0x1a0] sm:$0xff]
        %v226 = vld [vmem:[%s169 + $0x1a8] sm:$0xff]
        %v227 = vld [vmem:[%s169 + $0x1b0] sm:$0xff]
        %v228 = vld [vmem:[%s169 + $0x1b8] sm:$0xff]
        %v229 = vld [vmem:[%s169 + $0x1c0] sm:$0xff]
        %v230 = vld [vmem:[%s169 + $0x1c8] sm:$0xff]
        %v231 = vld [vmem:[%s169 + $0x1d0] sm:$0xff]
        %v232 = vld [vmem:[%s169 + $0x1d8] sm:$0xff]
        %v233 = vld [vmem:[%s169 + $0x1e0] sm:$0xff]
        %v234 = vld [vmem:[%s169 + $0x1e8] sm:$0xff]
        %v235 = vld [vmem:[%s169 + $0x1f0] sm:$0xff]
        %v236 = vld [vmem:[%s169 + $0x1f8] sm:$0xff]
        %v237 = vld [vmem:[%s169 + $0x200] sm:$0xff]
        %v238 = vld [vmem:[%s169 + $0x208] sm:$0xff]
        %v239 = vld [vmem:[%s169 + $0x210] sm:$0xff]
        %v240 = vld [vmem:[%s169 + $0x218] sm:$0xff]
        %v241 = vld [vmem:[%s169 + $0x220] sm:$0xff]
        %v242 = vld [vmem:[%s169 + $0x228] sm:$0xff]
        %v243 = vld [vmem:[%s169 + $0x230] sm:$0xff]
        %v244 = vld [vmem:[%s169 + $0x238] sm:$0xff]
        %v245 = vld [vmem:[%s169 + $0x240] sm:$0xff]
        %v246 = vld [vmem:[%s169 + $0x248] sm:$0xff]
        %v247 = vld [vmem:[%s169 + $0x250] sm:$0xff]
        %v248 = vld [vmem:[%s169 + $0x258] sm:$0xff]
        %v249 = vld [vmem:[%s169 + $0x260] sm:$0xff]
        %v250 = vld [vmem:[%s169 + $0x268] sm:$0xff]
        %v251 = vld [vmem:[%s169 + $0x270] sm:$0xff]
        %v252 = vld [vmem:[%s169 + $0x278] sm:$0xff]
        %v253 = vld [vmem:[%s169 + $0x280] sm:$0xff]
        %v254 = vld [vmem:[%s169 + $0x288] sm:$0xff]
        %v255 = vld [vmem:[%s169 + $0x290] sm:$0xff]
        %v256 = vld [vmem:[%s169 + $0x298] sm:$0xff]
        %v257 = vld [vmem:[%s169 + $0x2a0] sm:$0xff]
        %v258 = vld [vmem:[%s169 + $0x2a8] sm:$0xff]
        %v259 = vld [vmem:[%s169 + $0x2b0] sm:$0xff]
        %v260 = vld [vmem:[%s169 + $0x2b8] sm:$0xff]
        %v261 = vld [vmem:[%s169 + $0x2c0] sm:$0xff]
        %v262 = vld [vmem:[%s169 + $0x2c8] sm:$0xff]
        %v263 = vld [vmem:[%s169 + $0x2d0] sm:$0xff]
        %v264 = vld [vmem:[%s169 + $0x2d8] sm:$0xff]
        %v265 = vld [vmem:[%s169 + $0x2e0] sm:$0xff]
        %v266 = vld [vmem:[%s169 + $0x2e8] sm:$0xff]
        %v267 = vld [vmem:[%s169 + $0x2f0] sm:$0xff]
        %v268 = vld [vmem:[%s169 + $0x2f8] sm:$0xff]
        %v269 = vpack.c.bf16 %v174, %v173
        %v270 = vpack.c.bf16 %v176, %v175
        %v271 = vpack.c.bf16 %v178, %v177
        %v272 = vpack.c.bf16 %v180, %v179
        %v273 = vpack.c.bf16 %v182, %v181
        %v274 = vpack.c.bf16 %v184, %v183
        %v275 = vpack.c.bf16 %v186, %v185
        %v276 = vpack.c.bf16 %v188, %v187
        %v277 = vpack.c.bf16 %v190, %v189
        %v278 = vpack.c.bf16 %v192, %v191
        %v279 = vpack.c.bf16 %v194, %v193
        %v280 = vpack.c.bf16 %v196, %v195
        %v281 = vpack.c.bf16 %v198, %v197
        %v282 = vpack.c.bf16 %v200, %v199
        %v283 = vpack.c.bf16 %v202, %v201
        %v284 = vpack.c.bf16 %v204, %v203
        %v285 = vpack.c.bf16 %v206, %v205
        %v286 = vpack.c.bf16 %v208, %v207
        %v287 = vpack.c.bf16 %v210, %v209
        %v288 = vpack.c.bf16 %v212, %v211
        %v289 = vpack.c.bf16 %v214, %v213
        %v290 = vpack.c.bf16 %v216, %v215
        %v291 = vpack.c.bf16 %v218, %v217
        %v292 = vpack.c.bf16 %v220, %v219
        %v293 = vpack.c.bf16 %v222, %v221
        %v294 = vpack.c.bf16 %v224, %v223
        %v295 = vpack.c.bf16 %v226, %v225
        %v296 = vpack.c.bf16 %v228, %v227
        %v297 = vpack.c.bf16 %v230, %v229
        %v298 = vpack.c.bf16 %v232, %v231
        %v299 = vpack.c.bf16 %v234, %v233
        %v300 = vpack.c.bf16 %v236, %v235
        %v301 = vpack.c.bf16 %v238, %v237
        %v302 = vpack.c.bf16 %v240, %v239
        %v303 = vpack.c.bf16 %v242, %v241
        %v304 = vpack.c.bf16 %v244, %v243
        %v305 = vpack.c.bf16 %v246, %v245
        %v306 = vpack.c.bf16 %v248, %v247
        %v307 = vpack.c.bf16 %v250, %v249
        %v308 = vpack.c.bf16 %v252, %v251
        %v309 = vpack.c.bf16 %v254, %v253
        %v310 = vpack.c.bf16 %v256, %v255
        %v311 = vpack.c.bf16 %v258, %v257
        %v312 = vpack.c.bf16 %v260, %v259
        %v313 = vpack.c.bf16 %v262, %v261
        %v314 = vpack.c.bf16 %v264, %v263
        %v315 = vpack.c.bf16 %v266, %v265
        %v316 = vpack.c.bf16 %v268, %v267
        %v317 = vld [vmem:[%s1] sm:$0x3]
        %v318 = vld [vmem:[%s2] sm:$0x1]
        %v320 = vlaneseq
        %v321 = vshrl.u32 %v320, 7
        %v322 = vsub.s32 0, %v321
        %v323 = vrot.slane %v318, %v322
        %vm325 = vcmask 31744
        %v327 = vsel %vm325, %v269, 0
        %v330 = vsel %vm325, %v270, 0
        %v333 = vsel %vm325, %v271, 0
        %v336 = vsel %vm325, %v272, 0
        %v339 = vsel %vm325, %v273, 0
        %v342 = vsel %vm325, %v274, 0
        %v345 = vsel %vm325, %v275, 0
        %v348 = vsel %vm325, %v276, 0
        %v351 = vsel %vm325, %v277, 0
        %v354 = vsel %vm325, %v278, 0
        %v357 = vsel %vm325, %v279, 0
        %v360 = vsel %vm325, %v280, 0
        %v363 = vsel %vm325, %v281, 0
        %v366 = vsel %vm325, %v282, 0
        %v369 = vsel %vm325, %v283, 0
        %v372 = vsel %vm325, %v284, 0
        %v375 = vsel %vm325, %v285, 0
        %v378 = vsel %vm325, %v286, 0
        %v381 = vsel %vm325, %v287, 0
        %v384 = vsel %vm325, %v288, 0
        %v387 = vsel %vm325, %v289, 0
        %v390 = vsel %vm325, %v290, 0
        %v393 = vsel %vm325, %v291, 0
        %v396 = vsel %vm325, %v292, 0
        %v399 = vsel %vm325, %v293, 0
        %v402 = vsel %vm325, %v294, 0
        %v405 = vsel %vm325, %v295, 0
        %v408 = vsel %vm325, %v296, 0
        %v411 = vsel %vm325, %v297, 0
        %v414 = vsel %vm325, %v298, 0
        %v417 = vsel %vm325, %v299, 0
        %v420 = vsel %vm325, %v300, 0
        %v423 = vsel %vm325, %v301, 0
        %v426 = vsel %vm325, %v302, 0
        %v429 = vsel %vm325, %v303, 0
        %v432 = vsel %vm325, %v304, 0
        %v435 = vsel %vm325, %v305, 0
        %v438 = vsel %vm325, %v306, 0
        %v441 = vsel %vm325, %v307, 0
        %v444 = vsel %vm325, %v308, 0
        %v447 = vsel %vm325, %v309, 0
        %v450 = vsel %vm325, %v310, 0
        %v453 = vsel %vm325, %v311, 0
        %v456 = vsel %vm325, %v312, 0
        %v459 = vsel %vm325, %v313, 0
        %v462 = vsel %vm325, %v314, 0
        %v465 = vsel %vm325, %v315, 0
        %v468 = vsel %vm325, %v316, 0
        %vm470 = vcmask 1041408
        %v472 = vsel %vm470, %v317, 0
        %474 = vmatprep.subr.bf16.mxu0 0
        %475 = vmatpush1.bf16.msra.mxu0 %v472
        %476 = vmatprep.subr.bf16.mxu0 0
        %477 = vmatpush1.bf16.msra.mxu0 0
        %478 = vmatprep.subr.bf16.mxu0 0
        %479 = vmatpush1.bf16.msra.mxu0 0
        %480 = vmatprep.subr.bf16.mxu0 0
        %481 = vmatpush1.bf16.msra.mxu0 0
        %482 = vmatprep.subr.bf16.mxu0 0
        %483 = vmatpush1.bf16.msra.mxu0 0
        %484 = vmatprep.subr.bf16.mxu0 0
        %485 = vmatpush1.bf16.msra.mxu0 0
        %486 = vmatprep.subr.bf16.mxu0 0
        %487 = vmatpush1.bf16.msra.mxu0 0
        %488 = vmatprep.subr.bf16.mxu0 0
        %489 = vmatpush1.bf16.msra.mxu0 0
        %490 = vmatprep.subr.bf16.mxu0 0
        %491 = vmatpush1.bf16.msra.mxu0 0
        %492 = vmatprep.subr.bf16.mxu0 0
        %493 = vmatpush1.bf16.msra.mxu0 0
        %494 = vmatprep.subr.bf16.mxu0 0
        %495 = vmatpush1.bf16.msra.mxu0 0
        %496 = vmatprep.subr.bf16.mxu0 0
        %497 = vmatpush1.bf16.msra.mxu0 0
        %498 = vmatprep.subr.bf16.mxu0 0
        %499 = vmatpush1.bf16.msra.mxu0 0
        %500 = vmatprep.subr.bf16.mxu0 0
        %501 = vmatpush1.bf16.msra.mxu0 0
        %502 = vmatprep.subr.bf16.mxu0 0
        %503 = vmatpush1.bf16.msra.mxu0 0
        %504 = vmatprep.subr.bf16.mxu0 0
        %505 = vmatpush1.bf16.msra.mxu0 0
        %506 = vmatprep.mubr.bf16.mxu0 0
        %507 = vmatmul.mubr.bf16.gmra.mrb[0].mxu0 %v327
        %v508 = vpop.f32.mrb[0].mxu0
        %v509 = vadd.f32 %v323, %v508
        %v510 = vpop.f32.mrb[0].mxu0
        %v511 = vpop.f32.mrb[0].mxu0
        %v512 = vadd.f32 %v323, %v511
        %v513 = vpop.f32.mrb[0].mxu0
        %514 = vmatprep.mubr.bf16.mxu0 0
        %515 = vmatmul.mubr.bf16.gmra.mrb[0].mxu0 %v330
        %v516 = vpop.f32.mrb[0].mxu0
        %v517 = vadd.f32 %v323, %v516
        %v518 = vpop.f32.mrb[0].mxu0
        %v519 = vpop.f32.mrb[0].mxu0
        %v520 = vadd.f32 %v323, %v519
        %v521 = vpop.f32.mrb[0].mxu0
        %522 = vmatprep.mubr.bf16.mxu0 0
        %523 = vmatmul.mubr.bf16.gmra.mrb[0].mxu0 %v333
        %v524 = vpop.f32.mrb[0].mxu0
        %v525 = vadd.f32 %v323, %v524
        %v526 = vpop.f32.mrb[0].mxu0
        %v527 = vpop.f32.mrb[0].mxu0
        %v528 = vadd.f32 %v323, %v527
        %v529 = vpop.f32.mrb[0].mxu0
        %530 = vmatprep.mubr.bf16.mxu0 0
        %531 = vmatmul.mubr.bf16.gmra.mrb[0].mxu0 %v336
        %v532 = vpop.f32.mrb[0].mxu0
        %v533 = vadd.f32 %v323, %v532
        %v534 = vpop.f32.mrb[0].mxu0
        %v535 = vpop.f32.mrb[0].mxu0
        %v536 = vadd.f32 %v323, %v535
        %v537 = vpop.f32.mrb[0].mxu0
        %538 = vmatprep.mubr.bf16.mxu0 0
        %539 = vmatmul.mubr.bf16.gmra.mrb[0].mxu0 %v339
        %v540 = vpop.f32.mrb[0].mxu0
        %v541 = vadd.f32 %v323, %v540
        %v542 = vpop.f32.mrb[0].mxu0
        %v543 = vpop.f32.mrb[0].mxu0
        %v544 = vadd.f32 %v323, %v543
        %v545 = vpop.f32.mrb[0].mxu0
        %546 = vmatprep.mubr.bf16.mxu0 0
        %547 = vmatmul.mubr.bf16.gmra.mrb[0].mxu0 %v342
        %v548 = vpop.f32.mrb[0].mxu0
        %v549 = vadd.f32 %v323, %v548
        %v550 = vpop.f32.mrb[0].mxu0
        %v551 = vpop.f32.mrb[0].mxu0
        %v552 = vadd.f32 %v323, %v551
        %v553 = vpop.f32.mrb[0].mxu0
        %554 = vmatprep.mubr.bf16.mxu0 0
        %555 = vmatmul.mubr.bf16.gmra.mrb[0].mxu0 %v345
        %v556 = vpop.f32.mrb[0].mxu0
        %v557 = vadd.f32 %v323, %v556
        %v558 = vpop.f32.mrb[0].mxu0
        %v559 = vpop.f32.mrb[0].mxu0
        %v560 = vadd.f32 %v323, %v559
        %v561 = vpop.f32.mrb[0].mxu0
        %562 = vmatprep.mubr.bf16.mxu0 0
        %563 = vmatmul.mubr.bf16.gmra.mrb[0].mxu0 %v348
        %v564 = vpop.f32.mrb[0].mxu0
        %v565 = vadd.f32 %v323, %v564
        %v566 = vpop.f32.mrb[0].mxu0
        %v567 = vpop.f32.mrb[0].mxu0
        %v568 = vadd.f32 %v323, %v567
        %v569 = vpop.f32.mrb[0].mxu0
        %570 = vmatprep.mubr.bf16.mxu0 0
        %571 = vmatmul.mubr.bf16.gmra.mrb[0].mxu0 %v351
        %v572 = vpop.f32.mrb[0].mxu0
        %v573 = vadd.f32 %v323, %v572
        %v574 = vpop.f32.mrb[0].mxu0
        %v575 = vpop.f32.mrb[0].mxu0
        %v576 = vadd.f32 %v323, %v575
        %v577 = vpop.f32.mrb[0].mxu0
        %578 = vmatprep.mubr.bf16.mxu0 0
        %579 = vmatmul.mubr.bf16.gmra.mrb[0].mxu0 %v354
        %v580 = vpop.f32.mrb[0].mxu0
        %v581 = vadd.f32 %v323, %v580
        %v582 = vpop.f32.mrb[0].mxu0
        %v583 = vpop.f32.mrb[0].mxu0
        %v584 = vadd.f32 %v323, %v583
        %v585 = vpop.f32.mrb[0].mxu0
        %586 = vmatprep.mubr.bf16.mxu0 0
        %587 = vmatmul.mubr.bf16.gmra.mrb[0].mxu0 %v357
        %v588 = vpop.f32.mrb[0].mxu0
        %v589 = vadd.f32 %v323, %v588
        %v590 = vpop.f32.mrb[0].mxu0
        %v591 = vpop.f32.mrb[0].mxu0
        %v592 = vadd.f32 %v323, %v591
        %v593 = vpop.f32.mrb[0].mxu0
        %594 = vmatprep.mubr.bf16.mxu0 0
        %595 = vmatmul.mubr.bf16.gmra.mrb[0].mxu0 %v360
        %v596 = vpop.f32.mrb[0].mxu0
        %v597 = vadd.f32 %v323, %v596
        %v598 = vpop.f32.mrb[0].mxu0
        %v599 = vpop.f32.mrb[0].mxu0
        %v600 = vadd.f32 %v323, %v599
        %v601 = vpop.f32.mrb[0].mxu0
        %602 = vmatprep.mubr.bf16.mxu0 0
        %603 = vmatmul.mubr.bf16.gmra.mrb[0].mxu0 %v363
        %v604 = vpop.f32.mrb[0].mxu0
        %v605 = vadd.f32 %v323, %v604
        %v606 = vpop.f32.mrb[0].mxu0
        %v607 = vpop.f32.mrb[0].mxu0
        %v608 = vadd.f32 %v323, %v607
        %v609 = vpop.f32.mrb[0].mxu0
        %610 = vmatprep.mubr.bf16.mxu0 0
        %611 = vmatmul.mubr.bf16.gmra.mrb[0].mxu0 %v366
        %v612 = vpop.f32.mrb[0].mxu0
        %v613 = vadd.f32 %v323, %v612
        %v614 = vpop.f32.mrb[0].mxu0
        %v615 = vpop.f32.mrb[0].mxu0
        %v616 = vadd.f32 %v323, %v615
        %v617 = vpop.f32.mrb[0].mxu0
        %618 = vmatprep.mubr.bf16.mxu0 0
        %619 = vmatmul.mubr.bf16.gmra.mrb[0].mxu0 %v369
        %v620 = vpop.f32.mrb[0].mxu0
        %v621 = vadd.f32 %v323, %v620
        %v622 = vpop.f32.mrb[0].mxu0
        %v623 = vpop.f32.mrb[0].mxu0
        %v624 = vadd.f32 %v323, %v623
        %v625 = vpop.f32.mrb[0].mxu0
        %626 = vmatprep.mubr.bf16.mxu0 0
        %627 = vmatmul.mubr.bf16.gmra.mrb[0].mxu0 %v372
        %v628 = vpop.f32.mrb[0].mxu0
        %v629 = vadd.f32 %v323, %v628
        %v630 = vpop.f32.mrb[0].mxu0
        %v631 = vpop.f32.mrb[0].mxu0
        %v632 = vadd.f32 %v323, %v631
        %v633 = vpop.f32.mrb[0].mxu0
        %634 = vmatprep.mubr.bf16.mxu0 0
        %635 = vmatmul.mubr.bf16.gmra.mrb[0].mxu0 %v375
        %v636 = vpop.f32.mrb[0].mxu0
        %v637 = vadd.f32 %v323, %v636
        %v638 = vpop.f32.mrb[0].mxu0
        %v639 = vpop.f32.mrb[0].mxu0
        %v640 = vadd.f32 %v323, %v639
        %v641 = vpop.f32.mrb[0].mxu0
        %642 = vmatprep.mubr.bf16.mxu0 0
        %643 = vmatmul.mubr.bf16.gmra.mrb[0].mxu0 %v378
        %v644 = vpop.f32.mrb[0].mxu0
        %v645 = vadd.f32 %v323, %v644
        %v646 = vpop.f32.mrb[0].mxu0
        %v647 = vpop.f32.mrb[0].mxu0
        %v648 = vadd.f32 %v323, %v647
        %v649 = vpop.f32.mrb[0].mxu0
        %650 = vmatprep.mubr.bf16.mxu0 0
        %651 = vmatmul.mubr.bf16.gmra.mrb[0].mxu0 %v381
        %v652 = vpop.f32.mrb[0].mxu0
        %v653 = vadd.f32 %v323, %v652
        %v654 = vpop.f32.mrb[0].mxu0
        %v655 = vpop.f32.mrb[0].mxu0
        %v656 = vadd.f32 %v323, %v655
        %v657 = vpop.f32.mrb[0].mxu0
        %658 = vmatprep.mubr.bf16.mxu0 0
        %659 = vmatmul.mubr.bf16.gmra.mrb[0].mxu0 %v384
        %v660 = vpop.f32.mrb[0].mxu0
        %v661 = vadd.f32 %v323, %v660
        %v662 = vpop.f32.mrb[0].mxu0
        %v663 = vpop.f32.mrb[0].mxu0
        %v664 = vadd.f32 %v323, %v663
        %v665 = vpop.f32.mrb[0].mxu0
        %666 = vmatprep.mubr.bf16.mxu0 0
        %667 = vmatmul.mubr.bf16.gmra.mrb[0].mxu0 %v387
        %v668 = vpop.f32.mrb[0].mxu0
        %v669 = vadd.f32 %v323, %v668
        %v670 = vpop.f32.mrb[0].mxu0
        %v671 = vpop.f32.mrb[0].mxu0
        %v672 = vadd.f32 %v323, %v671
        %v673 = vpop.f32.mrb[0].mxu0
        %674 = vmatprep.mubr.bf16.mxu0 0
        %675 = vmatmul.mubr.bf16.gmra.mrb[0].mxu0 %v390
        %v676 = vpop.f32.mrb[0].mxu0
        %v677 = vadd.f32 %v323, %v676
        %v678 = vpop.f32.mrb[0].mxu0
        %v679 = vpop.f32.mrb[0].mxu0
        %v680 = vadd.f32 %v323, %v679
        %v681 = vpop.f32.mrb[0].mxu0
        %682 = vmatprep.mubr.bf16.mxu0 0
        %683 = vmatmul.mubr.bf16.gmra.mrb[0].mxu0 %v393
        %v684 = vpop.f32.mrb[0].mxu0
        %v685 = vadd.f32 %v323, %v684
        %v686 = vpop.f32.mrb[0].mxu0
        %v687 = vpop.f32.mrb[0].mxu0
        %v688 = vadd.f32 %v323, %v687
        %v689 = vpop.f32.mrb[0].mxu0
        %690 = vmatprep.mubr.bf16.mxu0 0
        %691 = vmatmul.mubr.bf16.gmra.mrb[0].mxu0 %v396
        %v692 = vpop.f32.mrb[0].mxu0
        %v693 = vadd.f32 %v323, %v692
        %v694 = vpop.f32.mrb[0].mxu0
        %v695 = vpop.f32.mrb[0].mxu0
        %v696 = vadd.f32 %v323, %v695
        %v697 = vpop.f32.mrb[0].mxu0
        %698 = vmatprep.mubr.bf16.mxu0 0
        %699 = vmatmul.mubr.bf16.gmra.mrb[0].mxu0 %v399
        %v700 = vpop.f32.mrb[0].mxu0
        %v701 = vadd.f32 %v323, %v700
        %v702 = vpop.f32.mrb[0].mxu0
        %v703 = vpop.f32.mrb[0].mxu0
        %v704 = vadd.f32 %v323, %v703
        %v705 = vpop.f32.mrb[0].mxu0
        %706 = vmatprep.mubr.bf16.mxu0 0
        %707 = vmatmul.mubr.bf16.gmra.mrb[0].mxu0 %v402
        %v708 = vpop.f32.mrb[0].mxu0
        %v709 = vadd.f32 %v323, %v708
        %v710 = vpop.f32.mrb[0].mxu0
        %v711 = vpop.f32.mrb[0].mxu0
        %v712 = vadd.f32 %v323, %v711
        %v713 = vpop.f32.mrb[0].mxu0
        %714 = vmatprep.mubr.bf16.mxu0 0
        %715 = vmatmul.mubr.bf16.gmra.mrb[0].mxu0 %v405
        %v716 = vpop.f32.mrb[0].mxu0
        %v717 = vadd.f32 %v323, %v716
        %v718 = vpop.f32.mrb[0].mxu0
        %v719 = vpop.f32.mrb[0].mxu0
        %v720 = vadd.f32 %v323, %v719
        %v721 = vpop.f32.mrb[0].mxu0
        %722 = vmatprep.mubr.bf16.mxu0 0
        %723 = vmatmul.mubr.bf16.gmra.mrb[0].mxu0 %v408
        %v724 = vpop.f32.mrb[0].mxu0
        %v725 = vadd.f32 %v323, %v724
        %v726 = vpop.f32.mrb[0].mxu0
        %v727 = vpop.f32.mrb[0].mxu0
        %v728 = vadd.f32 %v323, %v727
        %v729 = vpop.f32.mrb[0].mxu0
        %730 = vmatprep.mubr.bf16.mxu0 0
        %731 = vmatmul.mubr.bf16.gmra.mrb[0].mxu0 %v411
        %v732 = vpop.f32.mrb[0].mxu0
        %v733 = vadd.f32 %v323, %v732
        %v734 = vpop.f32.mrb[0].mxu0
        %v735 = vpop.f32.mrb[0].mxu0
        %v736 = vadd.f32 %v323, %v735
        %v737 = vpop.f32.mrb[0].mxu0
        %738 = vmatprep.mubr.bf16.mxu0 0
        %739 = vmatmul.mubr.bf16.gmra.mrb[0].mxu0 %v414
        %v740 = vpop.f32.mrb[0].mxu0
        %v741 = vadd.f32 %v323, %v740
        %v742 = vpop.f32.mrb[0].mxu0
        %v743 = vpop.f32.mrb[0].mxu0
        %v744 = vadd.f32 %v323, %v743
        %v745 = vpop.f32.mrb[0].mxu0
        %746 = vmatprep.mubr.bf16.mxu0 0
        %747 = vmatmul.mubr.bf16.gmra.mrb[0].mxu0 %v417
        %v748 = vpop.f32.mrb[0].mxu0
        %v749 = vadd.f32 %v323, %v748
        %v750 = vpop.f32.mrb[0].mxu0
        %v751 = vpop.f32.mrb[0].mxu0
        %v752 = vadd.f32 %v323, %v751
        %v753 = vpop.f32.mrb[0].mxu0
        %754 = vmatprep.mubr.bf16.mxu0 0
        %755 = vmatmul.mubr.bf16.gmra.mrb[0].mxu0 %v420
        %v756 = vpop.f32.mrb[0].mxu0
        %v757 = vadd.f32 %v323, %v756
        %v758 = vpop.f32.mrb[0].mxu0
        %v759 = vpop.f32.mrb[0].mxu0
        %v760 = vadd.f32 %v323, %v759
        %v761 = vpop.f32.mrb[0].mxu0
        %762 = vmatprep.mubr.bf16.mxu0 0
        %763 = vmatmul.mubr.bf16.gmra.mrb[0].mxu0 %v423
        %v764 = vpop.f32.mrb[0].mxu0
        %v765 = vadd.f32 %v323, %v764
        %v766 = vpop.f32.mrb[0].mxu0
        %v767 = vpop.f32.mrb[0].mxu0
        %v768 = vadd.f32 %v323, %v767
        %v769 = vpop.f32.mrb[0].mxu0
        %770 = vmatprep.mubr.bf16.mxu0 0
        %771 = vmatmul.mubr.bf16.gmra.mrb[0].mxu0 %v426
        %v772 = vpop.f32.mrb[0].mxu0
        %v773 = vadd.f32 %v323, %v772
        %v774 = vpop.f32.mrb[0].mxu0
        %v775 = vpop.f32.mrb[0].mxu0
        %v776 = vadd.f32 %v323, %v775
        %v777 = vpop.f32.mrb[0].mxu0
        %778 = vmatprep.mubr.bf16.mxu0 0
        %779 = vmatmul.mubr.bf16.gmra.mrb[0].mxu0 %v429
        %v780 = vpop.f32.mrb[0].mxu0
        %v781 = vadd.f32 %v323, %v780
        %v782 = vpop.f32.mrb[0].mxu0
        %v783 = vpop.f32.mrb[0].mxu0
        %v784 = vadd.f32 %v323, %v783
        %v785 = vpop.f32.mrb[0].mxu0
        %786 = vmatprep.mubr.bf16.mxu0 0
        %787 = vmatmul.mubr.bf16.gmra.mrb[0].mxu0 %v432
        %v788 = vpop.f32.mrb[0].mxu0
        %v789 = vadd.f32 %v323, %v788
        %v790 = vpop.f32.mrb[0].mxu0
        %v791 = vpop.f32.mrb[0].mxu0
        %v792 = vadd.f32 %v323, %v791
        %v793 = vpop.f32.mrb[0].mxu0
        %794 = vmatprep.mubr.bf16.mxu0 0
        %795 = vmatmul.mubr.bf16.gmra.mrb[0].mxu0 %v435
        %v796 = vpop.f32.mrb[0].mxu0
        %v797 = vadd.f32 %v323, %v796
        %v798 = vpop.f32.mrb[0].mxu0
        %v799 = vpop.f32.mrb[0].mxu0
        %v800 = vadd.f32 %v323, %v799
        %v801 = vpop.f32.mrb[0].mxu0
        %802 = vmatprep.mubr.bf16.mxu0 0
        %803 = vmatmul.mubr.bf16.gmra.mrb[0].mxu0 %v438
        %v804 = vpop.f32.mrb[0].mxu0
        %v805 = vadd.f32 %v323, %v804
        %v806 = vpop.f32.mrb[0].mxu0
        %v807 = vpop.f32.mrb[0].mxu0
        %v808 = vadd.f32 %v323, %v807
        %v809 = vpop.f32.mrb[0].mxu0
        %810 = vmatprep.mubr.bf16.mxu0 0
        %811 = vmatmul.mubr.bf16.gmra.mrb[0].mxu0 %v441
        %v812 = vpop.f32.mrb[0].mxu0
        %v813 = vadd.f32 %v323, %v812
        %v814 = vpop.f32.mrb[0].mxu0
        %v815 = vpop.f32.mrb[0].mxu0
        %v816 = vadd.f32 %v323, %v815
        %v817 = vpop.f32.mrb[0].mxu0
        %818 = vmatprep.mubr.bf16.mxu0 0
        %819 = vmatmul.mubr.bf16.gmra.mrb[0].mxu0 %v444
        %v820 = vpop.f32.mrb[0].mxu0
        %v821 = vadd.f32 %v323, %v820
        %v822 = vpop.f32.mrb[0].mxu0
        %v823 = vpop.f32.mrb[0].mxu0
        %v824 = vadd.f32 %v323, %v823
        %v825 = vpop.f32.mrb[0].mxu0
        %826 = vmatprep.mubr.bf16.mxu0 0
        %827 = vmatmul.mubr.bf16.gmra.mrb[0].mxu0 %v447
        %v828 = vpop.f32.mrb[0].mxu0
        %v829 = vadd.f32 %v323, %v828
        %v830 = vpop.f32.mrb[0].mxu0
        %v831 = vpop.f32.mrb[0].mxu0
        %v832 = vadd.f32 %v323, %v831
        %v833 = vpop.f32.mrb[0].mxu0
        %834 = vmatprep.mubr.bf16.mxu0 0
        %835 = vmatmul.mubr.bf16.gmra.mrb[0].mxu0 %v450
        %v836 = vpop.f32.mrb[0].mxu0
        %v837 = vadd.f32 %v323, %v836
        %v838 = vpop.f32.mrb[0].mxu0
        %v839 = vpop.f32.mrb[0].mxu0
        %v840 = vadd.f32 %v323, %v839
        %v841 = vpop.f32.mrb[0].mxu0
        %842 = vmatprep.mubr.bf16.mxu0 0
        %843 = vmatmul.mubr.bf16.gmra.mrb[0].mxu0 %v453
        %v844 = vpop.f32.mrb[0].mxu0
        %v845 = vadd.f32 %v323, %v844
        %v846 = vpop.f32.mrb[0].mxu0
        %v847 = vpop.f32.mrb[0].mxu0
        %v848 = vadd.f32 %v323, %v847
        %v849 = vpop.f32.mrb[0].mxu0
        %850 = vmatprep.mubr.bf16.mxu0 0
        %851 = vmatmul.mubr.bf16.gmra.mrb[0].mxu0 %v456
        %v852 = vpop.f32.mrb[0].mxu0
        %v853 = vadd.f32 %v323, %v852
        %v854 = vpop.f32.mrb[0].mxu0
        %v855 = vpop.f32.mrb[0].mxu0
        %v856 = vadd.f32 %v323, %v855
        %v857 = vpop.f32.mrb[0].mxu0
        %858 = vmatprep.mubr.bf16.mxu0 0
        %859 = vmatmul.mubr.bf16.gmra.mrb[0].mxu0 %v459
        %v860 = vpop.f32.mrb[0].mxu0
        %v861 = vadd.f32 %v323, %v860
        %v862 = vpop.f32.mrb[0].mxu0
        %v863 = vpop.f32.mrb[0].mxu0
        %v864 = vadd.f32 %v323, %v863
        %v865 = vpop.f32.mrb[0].mxu0
        %866 = vmatprep.mubr.bf16.mxu0 0
        %867 = vmatmul.mubr.bf16.gmra.mrb[0].mxu0 %v462
        %v868 = vpop.f32.mrb[0].mxu0
        %v869 = vadd.f32 %v323, %v868
        %v870 = vpop.f32.mrb[0].mxu0
        %v871 = vpop.f32.mrb[0].mxu0
        %v872 = vadd.f32 %v323, %v871
        %v873 = vpop.f32.mrb[0].mxu0
        %874 = vmatprep.mubr.bf16.mxu0 0
        %875 = vmatmul.mubr.bf16.gmra.mrb[0].mxu0 %v465
        %v876 = vpop.f32.mrb[0].mxu0
        %v877 = vadd.f32 %v323, %v876
        %v878 = vpop.f32.mrb[0].mxu0
        %v879 = vpop.f32.mrb[0].mxu0
        %v880 = vadd.f32 %v323, %v879
        %v881 = vpop.f32.mrb[0].mxu0
        %882 = vmatprep.mubr.bf16.mxu0 0
        %883 = vmatmul.mubr.bf16.gmra.mrb[0].mxu0 %v468
        %v884 = vpop.f32.mrb[0].mxu0
        %v885 = vadd.f32 %v323, %v884
        %v886 = vpop.f32.mrb[0].mxu0
        %v887 = vpop.f32.mrb[0].mxu0
        %v888 = vadd.f32 %v323, %v887
        %v889 = vpop.f32.mrb[0].mxu0
        %890 = vdwg.mxu0
        %v891 = vxor.u32 %v509, 2147483648
        %v892 = vxor.u32 %v512, 2147483648
        %v893 = vxor.u32 %v517, 2147483648
        %v894 = vxor.u32 %v520, 2147483648
        %v895 = vxor.u32 %v525, 2147483648
        %v896 = vxor.u32 %v528, 2147483648
        %v897 = vxor.u32 %v533, 2147483648
        %v898 = vxor.u32 %v536, 2147483648
        %v899 = vxor.u32 %v541, 2147483648
        %v900 = vxor.u32 %v544, 2147483648
        %v901 = vxor.u32 %v549, 2147483648
        %v902 = vxor.u32 %v552, 2147483648
        %v903 = vxor.u32 %v557, 2147483648
        %v904 = vxor.u32 %v560, 2147483648
        %v905 = vxor.u32 %v565, 2147483648
        %v906 = vxor.u32 %v568, 2147483648
        %v907 = vxor.u32 %v573, 2147483648
        %v908 = vxor.u32 %v576, 2147483648
        %v909 = vxor.u32 %v581, 2147483648
        %v910 = vxor.u32 %v584, 2147483648
        %v911 = vxor.u32 %v589, 2147483648
        %v912 = vxor.u32 %v592, 2147483648
        %v913 = vxor.u32 %v597, 2147483648
        %v914 = vxor.u32 %v600, 2147483648
        %v915 = vxor.u32 %v605, 2147483648
        %v916 = vxor.u32 %v608, 2147483648
        %v917 = vxor.u32 %v613, 2147483648
        %v918 = vxor.u32 %v616, 2147483648
        %v919 = vxor.u32 %v621, 2147483648
        %v920 = vxor.u32 %v624, 2147483648
        %v921 = vxor.u32 %v629, 2147483648
        %v922 = vxor.u32 %v632, 2147483648
        %v923 = vxor.u32 %v637, 2147483648
        %v924 = vxor.u32 %v640, 2147483648
        %v925 = vxor.u32 %v645, 2147483648
        %v926 = vxor.u32 %v648, 2147483648
        %v927 = vxor.u32 %v653, 2147483648
        %v928 = vxor.u32 %v656, 2147483648
        %v929 = vxor.u32 %v661, 2147483648
        %v930 = vxor.u32 %v664, 2147483648
        %v931 = vxor.u32 %v669, 2147483648
        %v932 = vxor.u32 %v672, 2147483648
        %v933 = vxor.u32 %v677, 2147483648
        %v934 = vxor.u32 %v680, 2147483648
        %v935 = vxor.u32 %v685, 2147483648
        %v936 = vxor.u32 %v688, 2147483648
        %v937 = vxor.u32 %v693, 2147483648
        %v938 = vxor.u32 %v696, 2147483648
        %v939 = vxor.u32 %v701, 2147483648
        %v940 = vxor.u32 %v704, 2147483648
        %v941 = vxor.u32 %v709, 2147483648
        %v942 = vxor.u32 %v712, 2147483648
        %v943 = vxor.u32 %v717, 2147483648
        %v944 = vxor.u32 %v720, 2147483648
        %v945 = vxor.u32 %v725, 2147483648
        %v946 = vxor.u32 %v728, 2147483648
        %v947 = vxor.u32 %v733, 2147483648
        %v948 = vxor.u32 %v736, 2147483648
        %v949 = vxor.u32 %v741, 2147483648
        %v950 = vxor.u32 %v744, 2147483648
        %v951 = vxor.u32 %v749, 2147483648
        %v952 = vxor.u32 %v752, 2147483648
        %v953 = vxor.u32 %v757, 2147483648
        %v954 = vxor.u32 %v760, 2147483648
        %v955 = vxor.u32 %v765, 2147483648
        %v956 = vxor.u32 %v768, 2147483648
        %v957 = vxor.u32 %v773, 2147483648
        %v958 = vxor.u32 %v776, 2147483648
        %v959 = vxor.u32 %v781, 2147483648
        %v960 = vxor.u32 %v784, 2147483648
        %v961 = vxor.u32 %v789, 2147483648
        %v962 = vxor.u32 %v792, 2147483648
        %v963 = vxor.u32 %v797, 2147483648
        %v964 = vxor.u32 %v800, 2147483648
        %v965 = vxor.u32 %v805, 2147483648
        %v966 = vxor.u32 %v808, 2147483648
        %v967 = vxor.u32 %v813, 2147483648
        %v968 = vxor.u32 %v816, 2147483648
        %v969 = vxor.u32 %v821, 2147483648
        %v970 = vxor.u32 %v824, 2147483648
        %v971 = vxor.u32 %v829, 2147483648
        %v972 = vxor.u32 %v832, 2147483648
        %v973 = vxor.u32 %v837, 2147483648
        %v974 = vxor.u32 %v840, 2147483648
        %v975 = vxor.u32 %v845, 2147483648
        %v976 = vxor.u32 %v848, 2147483648
        %v977 = vxor.u32 %v853, 2147483648
        %v978 = vxor.u32 %v856, 2147483648
        %v979 = vxor.u32 %v861, 2147483648
        %v980 = vxor.u32 %v864, 2147483648
        %v981 = vxor.u32 %v869, 2147483648
        %v982 = vxor.u32 %v872, 2147483648
        %v983 = vxor.u32 %v877, 2147483648
        %v984 = vxor.u32 %v880, 2147483648
        %v985 = vxor.u32 %v885, 2147483648
        %v986 = vxor.u32 %v888, 2147483648
        %v987 = vmul.f32 %v891, 1.442695
        %v988 = vpow.pop %v987
        %v989 = vmul.f32 %v892, 1.442695
        %v990 = vpow.pop %v989
        %v991 = vmul.f32 %v893, 1.442695
        %v992 = vpow.pop %v991
        %v993 = vmul.f32 %v894, 1.442695
        %v994 = vpow.pop %v993
        %v995 = vmul.f32 %v895, 1.442695
        %v996 = vpow.pop %v995
        %v997 = vmul.f32 %v896, 1.442695
        %v998 = vpow.pop %v997
        %v999 = vmul.f32 %v897, 1.442695
        %v1000 = vpow.pop %v999
        %v1001 = vmul.f32 %v898, 1.442695
        %v1002 = vpow.pop %v1001
        %v1003 = vmul.f32 %v899, 1.442695
        %v1004 = vpow.pop %v1003
        %v1005 = vmul.f32 %v900, 1.442695
        %v1006 = vpow.pop %v1005
        %v1007 = vmul.f32 %v901, 1.442695
        %v1008 = vpow.pop %v1007
        %v1009 = vmul.f32 %v902, 1.442695
        %v1010 = vpow.pop %v1009
        %v1011 = vmul.f32 %v903, 1.442695
        %v1012 = vpow.pop %v1011
        %v1013 = vmul.f32 %v904, 1.442695
        %v1014 = vpow.pop %v1013
        %v1015 = vmul.f32 %v905, 1.442695
        %v1016 = vpow.pop %v1015
        %v1017 = vmul.f32 %v906, 1.442695
        %v1018 = vpow.pop %v1017
        %v1019 = vmul.f32 %v907, 1.442695
        %v1020 = vpow.pop %v1019
        %v1021 = vmul.f32 %v908, 1.442695
        %v1022 = vpow.pop %v1021
        %v1023 = vmul.f32 %v909, 1.442695
        %v1024 = vpow.pop %v1023
        %v1025 = vmul.f32 %v910, 1.442695
        %v1026 = vpow.pop %v1025
        %v1027 = vmul.f32 %v911, 1.442695
        %v1028 = vpow.pop %v1027
        %v1029 = vmul.f32 %v912, 1.442695
        %v1030 = vpow.pop %v1029
        %v1031 = vmul.f32 %v913, 1.442695
        %v1032 = vpow.pop %v1031
        %v1033 = vmul.f32 %v914, 1.442695
        %v1034 = vpow.pop %v1033
        %v1035 = vmul.f32 %v915, 1.442695
        %v1036 = vpow.pop %v1035
        %v1037 = vmul.f32 %v916, 1.442695
        %v1038 = vpow.pop %v1037
        %v1039 = vmul.f32 %v917, 1.442695
        %v1040 = vpow.pop %v1039
        %v1041 = vmul.f32 %v918, 1.442695
        %v1042 = vpow.pop %v1041
        %v1043 = vmul.f32 %v919, 1.442695
        %v1044 = vpow.pop %v1043
        %v1045 = vmul.f32 %v920, 1.442695
        %v1046 = vpow.pop %v1045
        %v1047 = vmul.f32 %v921, 1.442695
        %v1048 = vpow.pop %v1047
        %v1049 = vmul.f32 %v922, 1.442695
        %v1050 = vpow.pop %v1049
        %v1051 = vmul.f32 %v923, 1.442695
        %v1052 = vpow.pop %v1051
        %v1053 = vmul.f32 %v924, 1.442695
        %v1054 = vpow.pop %v1053
        %v1055 = vmul.f32 %v925, 1.442695
        %v1056 = vpow.pop %v1055
        %v1057 = vmul.f32 %v926, 1.442695
        %v1058 = vpow.pop %v1057
        %v1059 = vmul.f32 %v927, 1.442695
        %v1060 = vpow.pop %v1059
        %v1061 = vmul.f32 %v928, 1.442695
        %v1062 = vpow.pop %v1061
        %v1063 = vmul.f32 %v929, 1.442695
        %v1064 = vpow.pop %v1063
        %v1065 = vmul.f32 %v930, 1.442695
        %v1066 = vpow.pop %v1065
        %v1067 = vmul.f32 %v931, 1.442695
        %v1068 = vpow.pop %v1067
        %v1069 = vmul.f32 %v932, 1.442695
        %v1070 = vpow.pop %v1069
        %v1071 = vmul.f32 %v933, 1.442695
        %v1072 = vpow.pop %v1071
        %v1073 = vmul.f32 %v934, 1.442695
        %v1074 = vpow.pop %v1073
        %v1075 = vmul.f32 %v935, 1.442695
        %v1076 = vpow.pop %v1075
        %v1077 = vmul.f32 %v936, 1.442695
        %v1078 = vpow.pop %v1077
        %v1079 = vmul.f32 %v937, 1.442695
        %v1080 = vpow.pop %v1079
        %v1081 = vmul.f32 %v938, 1.442695
        %v1082 = vpow.pop %v1081
        %v1083 = vmul.f32 %v939, 1.442695
        %v1084 = vpow.pop %v1083
        %v1085 = vmul.f32 %v940, 1.442695
        %v1086 = vpow.pop %v1085
        %v1087 = vmul.f32 %v941, 1.442695
        %v1088 = vpow.pop %v1087
        %v1089 = vmul.f32 %v942, 1.442695
        %v1090 = vpow.pop %v1089
        %v1091 = vmul.f32 %v943, 1.442695
        %v1092 = vpow.pop %v1091
        %v1093 = vmul.f32 %v944, 1.442695
        %v1094 = vpow.pop %v1093
        %v1095 = vmul.f32 %v945, 1.442695
        %v1096 = vpow.pop %v1095
        %v1097 = vmul.f32 %v946, 1.442695
        %v1098 = vpow.pop %v1097
        %v1099 = vmul.f32 %v947, 1.442695
        %v1100 = vpow.pop %v1099
        %v1101 = vmul.f32 %v948, 1.442695
        %v1102 = vpow.pop %v1101
        %v1103 = vmul.f32 %v949, 1.442695
        %v1104 = vpow.pop %v1103
        %v1105 = vmul.f32 %v950, 1.442695
        %v1106 = vpow.pop %v1105
        %v1107 = vmul.f32 %v951, 1.442695
        %v1108 = vpow.pop %v1107
        %v1109 = vmul.f32 %v952, 1.442695
        %v1110 = vpow.pop %v1109
        %v1111 = vmul.f32 %v953, 1.442695
        %v1112 = vpow.pop %v1111
        %v1113 = vmul.f32 %v954, 1.442695
        %v1114 = vpow.pop %v1113
        %v1115 = vmul.f32 %v955, 1.442695
        %v1116 = vpow.pop %v1115
        %v1117 = vmul.f32 %v956, 1.442695
        %v1118 = vpow.pop %v1117
        %v1119 = vmul.f32 %v957, 1.442695
        %v1120 = vpow.pop %v1119
        %v1121 = vmul.f32 %v958, 1.442695
        %v1122 = vpow.pop %v1121
        %v1123 = vmul.f32 %v959, 1.442695
        %v1124 = vpow.pop %v1123
        %v1125 = vmul.f32 %v960, 1.442695
        %v1126 = vpow.pop %v1125
        %v1127 = vmul.f32 %v961, 1.442695
        %v1128 = vpow.pop %v1127
        %v1129 = vmul.f32 %v962, 1.442695
        %v1130 = vpow.pop %v1129
        %v1131 = vmul.f32 %v963, 1.442695
        %v1132 = vpow.pop %v1131
        %v1133 = vmul.f32 %v964, 1.442695
        %v1134 = vpow.pop %v1133
        %v1135 = vmul.f32 %v965, 1.442695
        %v1136 = vpow.pop %v1135
        %v1137 = vmul.f32 %v966, 1.442695
        %v1138 = vpow.pop %v1137
        %v1139 = vmul.f32 %v967, 1.442695
        %v1140 = vpow.pop %v1139
        %v1141 = vmul.f32 %v968, 1.442695
        %v1142 = vpow.pop %v1141
        %v1143 = vmul.f32 %v969, 1.442695
        %v1144 = vpow.pop %v1143
        %v1145 = vmul.f32 %v970, 1.442695
        %v1146 = vpow.pop %v1145
        %v1147 = vmul.f32 %v971, 1.442695
        %v1148 = vpow.pop %v1147
        %v1149 = vmul.f32 %v972, 1.442695
        %v1150 = vpow.pop %v1149
        %v1151 = vmul.f32 %v973, 1.442695
        %v1152 = vpow.pop %v1151
        %v1153 = vmul.f32 %v974, 1.442695
        %v1154 = vpow.pop %v1153
        %v1155 = vmul.f32 %v975, 1.442695
        %v1156 = vpow.pop %v1155
        %v1157 = vmul.f32 %v976, 1.442695
        %v1158 = vpow.pop %v1157
        %v1159 = vmul.f32 %v977, 1.442695
        %v1160 = vpow.pop %v1159
        %v1161 = vmul.f32 %v978, 1.442695
        %v1162 = vpow.pop %v1161
        %v1163 = vmul.f32 %v979, 1.442695
        %v1164 = vpow.pop %v1163
        %v1165 = vmul.f32 %v980, 1.442695
        %v1166 = vpow.pop %v1165
        %v1167 = vmul.f32 %v981, 1.442695
        %v1168 = vpow.pop %v1167
        %v1169 = vmul.f32 %v982, 1.442695
        %v1170 = vpow.pop %v1169
        %v1171 = vmul.f32 %v983, 1.442695
        %v1172 = vpow.pop %v1171
        %v1173 = vmul.f32 %v984, 1.442695
        %v1174 = vpow.pop %v1173
        %v1175 = vmul.f32 %v985, 1.442695
        %v1176 = vpow.pop %v1175
        %v1177 = vmul.f32 %v986, 1.442695
        %v1178 = vpow.pop %v1177
        %v1179 = vadd.f32 %v988, 1.0
        %v1180 = vadd.f32 %v990, 1.0
        %v1181 = vadd.f32 %v992, 1.0
        %v1182 = vadd.f32 %v994, 1.0
        %v1183 = vadd.f32 %v996, 1.0
        %v1184 = vadd.f32 %v998, 1.0
        %v1185 = vadd.f32 %v1000, 1.0
        %v1186 = vadd.f32 %v1002, 1.0
        %v1187 = vadd.f32 %v1004, 1.0
        %v1188 = vadd.f32 %v1006, 1.0
        %v1189 = vadd.f32 %v1008, 1.0
        %v1190 = vadd.f32 %v1010, 1.0
        %v1191 = vadd.f32 %v1012, 1.0
        %v1192 = vadd.f32 %v1014, 1.0
        %v1193 = vadd.f32 %v1016, 1.0
        %v1194 = vadd.f32 %v1018, 1.0
        %v1195 = vadd.f32 %v1020, 1.0
        %v1196 = vadd.f32 %v1022, 1.0
        %v1197 = vadd.f32 %v1024, 1.0
        %v1198 = vadd.f32 %v1026, 1.0
        %v1199 = vadd.f32 %v1028, 1.0
        %v1200 = vadd.f32 %v1030, 1.0
        %v1201 = vadd.f32 %v1032, 1.0
        %v1202 = vadd.f32 %v1034, 1.0
        %v1203 = vadd.f32 %v1036, 1.0
        %v1204 = vadd.f32 %v1038, 1.0
        %v1205 = vadd.f32 %v1040, 1.0
        %v1206 = vadd.f32 %v1042, 1.0
        %v1207 = vadd.f32 %v1044, 1.0
        %v1208 = vadd.f32 %v1046, 1.0
        %v1209 = vadd.f32 %v1048, 1.0
        %v1210 = vadd.f32 %v1050, 1.0
        %v1211 = vadd.f32 %v1052, 1.0
        %v1212 = vadd.f32 %v1054, 1.0
        %v1213 = vadd.f32 %v1056, 1.0
        %v1214 = vadd.f32 %v1058, 1.0
        %v1215 = vadd.f32 %v1060, 1.0
        %v1216 = vadd.f32 %v1062, 1.0
        %v1217 = vadd.f32 %v1064, 1.0
        %v1218 = vadd.f32 %v1066, 1.0
        %v1219 = vadd.f32 %v1068, 1.0
        %v1220 = vadd.f32 %v1070, 1.0
        %v1221 = vadd.f32 %v1072, 1.0
        %v1222 = vadd.f32 %v1074, 1.0
        %v1223 = vadd.f32 %v1076, 1.0
        %v1224 = vadd.f32 %v1078, 1.0
        %v1225 = vadd.f32 %v1080, 1.0
        %v1226 = vadd.f32 %v1082, 1.0
        %v1227 = vadd.f32 %v1084, 1.0
        %v1228 = vadd.f32 %v1086, 1.0
        %v1229 = vadd.f32 %v1088, 1.0
        %v1230 = vadd.f32 %v1090, 1.0
        %v1231 = vadd.f32 %v1092, 1.0
        %v1232 = vadd.f32 %v1094, 1.0
        %v1233 = vadd.f32 %v1096, 1.0
        %v1234 = vadd.f32 %v1098, 1.0
        %v1235 = vadd.f32 %v1100, 1.0
        %v1236 = vadd.f32 %v1102, 1.0
        %v1237 = vadd.f32 %v1104, 1.0
        %v1238 = vadd.f32 %v1106, 1.0
        %v1239 = vadd.f32 %v1108, 1.0
        %v1240 = vadd.f32 %v1110, 1.0
        %v1241 = vadd.f32 %v1112, 1.0
        %v1242 = vadd.f32 %v1114, 1.0
        %v1243 = vadd.f32 %v1116, 1.0
        %v1244 = vadd.f32 %v1118, 1.0
        %v1245 = vadd.f32 %v1120, 1.0
        %v1246 = vadd.f32 %v1122, 1.0
        %v1247 = vadd.f32 %v1124, 1.0
        %v1248 = vadd.f32 %v1126, 1.0
        %v1249 = vadd.f32 %v1128, 1.0
        %v1250 = vadd.f32 %v1130, 1.0
        %v1251 = vadd.f32 %v1132, 1.0
        %v1252 = vadd.f32 %v1134, 1.0
        %v1253 = vadd.f32 %v1136, 1.0
        %v1254 = vadd.f32 %v1138, 1.0
        %v1255 = vadd.f32 %v1140, 1.0
        %v1256 = vadd.f32 %v1142, 1.0
        %v1257 = vadd.f32 %v1144, 1.0
        %v1258 = vadd.f32 %v1146, 1.0
        %v1259 = vadd.f32 %v1148, 1.0
        %v1260 = vadd.f32 %v1150, 1.0
        %v1261 = vadd.f32 %v1152, 1.0
        %v1262 = vadd.f32 %v1154, 1.0
        %v1263 = vadd.f32 %v1156, 1.0
        %v1264 = vadd.f32 %v1158, 1.0
        %v1265 = vadd.f32 %v1160, 1.0
        %v1266 = vadd.f32 %v1162, 1.0
        %v1267 = vadd.f32 %v1164, 1.0
        %v1268 = vadd.f32 %v1166, 1.0
        %v1269 = vadd.f32 %v1168, 1.0
        %v1270 = vadd.f32 %v1170, 1.0
        %v1271 = vadd.f32 %v1172, 1.0
        %v1272 = vadd.f32 %v1174, 1.0
        %v1273 = vadd.f32 %v1176, 1.0
        %v1274 = vadd.f32 %v1178, 1.0
        %v1275 = vrcp.pop %v1179
        %v1276 = vmul.f32 1.0, %v1275
        %v1277 = vrcp.pop %v1180
        %v1278 = vmul.f32 1.0, %v1277
        %v1279 = vrcp.pop %v1181
        %v1280 = vmul.f32 1.0, %v1279
        %v1281 = vrcp.pop %v1182
        %v1282 = vmul.f32 1.0, %v1281
        %v1283 = vrcp.pop %v1183
        %v1284 = vmul.f32 1.0, %v1283
        %v1285 = vrcp.pop %v1184
        %v1286 = vmul.f32 1.0, %v1285
        %v1287 = vrcp.pop %v1185
        %v1288 = vmul.f32 1.0, %v1287
        %v1289 = vrcp.pop %v1186
        %v1290 = vmul.f32 1.0, %v1289
        %v1291 = vrcp.pop %v1187
        %v1292 = vmul.f32 1.0, %v1291
        %v1293 = vrcp.pop %v1188
        %v1294 = vmul.f32 1.0, %v1293
        %v1295 = vrcp.pop %v1189
        %v1296 = vmul.f32 1.0, %v1295
        %v1297 = vrcp.pop %v1190
        %v1298 = vmul.f32 1.0, %v1297
        %v1299 = vrcp.pop %v1191
        %v1300 = vmul.f32 1.0, %v1299
        %v1301 = vrcp.pop %v1192
        %v1302 = vmul.f32 1.0, %v1301
        %v1303 = vrcp.pop %v1193
        %v1304 = vmul.f32 1.0, %v1303
        %v1305 = vrcp.pop %v1194
        %v1306 = vmul.f32 1.0, %v1305
        %v1307 = vrcp.pop %v1195
        %v1308 = vmul.f32 1.0, %v1307
        %v1309 = vrcp.pop %v1196
        %v1310 = vmul.f32 1.0, %v1309
        %v1311 = vrcp.pop %v1197
        %v1312 = vmul.f32 1.0, %v1311
        %v1313 = vrcp.pop %v1198
        %v1314 = vmul.f32 1.0, %v1313
        %v1315 = vrcp.pop %v1199
        %v1316 = vmul.f32 1.0, %v1315
        %v1317 = vrcp.pop %v1200
        %v1318 = vmul.f32 1.0, %v1317
        %v1319 = vrcp.pop %v1201
        %v1320 = vmul.f32 1.0, %v1319
        %v1321 = vrcp.pop %v1202
        %v1322 = vmul.f32 1.0, %v1321
        %v1323 = vrcp.pop %v1203
        %v1324 = vmul.f32 1.0, %v1323
        %v1325 = vrcp.pop %v1204
        %v1326 = vmul.f32 1.0, %v1325
        %v1327 = vrcp.pop %v1205
        %v1328 = vmul.f32 1.0, %v1327
        %v1329 = vrcp.pop %v1206
        %v1330 = vmul.f32 1.0, %v1329
        %v1331 = vrcp.pop %v1207
        %v1332 = vmul.f32 1.0, %v1331
        %v1333 = vrcp.pop %v1208
        %v1334 = vmul.f32 1.0, %v1333
        %v1335 = vrcp.pop %v1209
        %v1336 = vmul.f32 1.0, %v1335
        %v1337 = vrcp.pop %v1210
        %v1338 = vmul.f32 1.0, %v1337
        %v1339 = vrcp.pop %v1211
        %v1340 = vmul.f32 1.0, %v1339
        %v1341 = vrcp.pop %v1212
        %v1342 = vmul.f32 1.0, %v1341
        %v1343 = vrcp.pop %v1213
        %v1344 = vmul.f32 1.0, %v1343
        %v1345 = vrcp.pop %v1214
        %v1346 = vmul.f32 1.0, %v1345
        %v1347 = vrcp.pop %v1215
        %v1348 = vmul.f32 1.0, %v1347
        %v1349 = vrcp.pop %v1216
        %v1350 = vmul.f32 1.0, %v1349
        %v1351 = vrcp.pop %v1217
        %v1352 = vmul.f32 1.0, %v1351
        %v1353 = vrcp.pop %v1218
        %v1354 = vmul.f32 1.0, %v1353
        %v1355 = vrcp.pop %v1219
        %v1356 = vmul.f32 1.0, %v1355
        %v1357 = vrcp.pop %v1220
        %v1358 = vmul.f32 1.0, %v1357
        %v1359 = vrcp.pop %v1221
        %v1360 = vmul.f32 1.0, %v1359
        %v1361 = vrcp.pop %v1222
        %v1362 = vmul.f32 1.0, %v1361
        %v1363 = vrcp.pop %v1223
        %v1364 = vmul.f32 1.0, %v1363
        %v1365 = vrcp.pop %v1224
        %v1366 = vmul.f32 1.0, %v1365
        %v1367 = vrcp.pop %v1225
        %v1368 = vmul.f32 1.0, %v1367
        %v1369 = vrcp.pop %v1226
        %v1370 = vmul.f32 1.0, %v1369
        %v1371 = vrcp.pop %v1227
        %v1372 = vmul.f32 1.0, %v1371
        %v1373 = vrcp.pop %v1228
        %v1374 = vmul.f32 1.0, %v1373
        %v1375 = vrcp.pop %v1229
        %v1376 = vmul.f32 1.0, %v1375
        %v1377 = vrcp.pop %v1230
        %v1378 = vmul.f32 1.0, %v1377
        %v1379 = vrcp.pop %v1231
        %v1380 = vmul.f32 1.0, %v1379
        %v1381 = vrcp.pop %v1232
        %v1382 = vmul.f32 1.0, %v1381
        %v1383 = vrcp.pop %v1233
        %v1384 = vmul.f32 1.0, %v1383
        %v1385 = vrcp.pop %v1234
        %v1386 = vmul.f32 1.0, %v1385
        %v1387 = vrcp.pop %v1235
        %v1388 = vmul.f32 1.0, %v1387
        %v1389 = vrcp.pop %v1236
        %v1390 = vmul.f32 1.0, %v1389
        %v1391 = vrcp.pop %v1237
        %v1392 = vmul.f32 1.0, %v1391
        %v1393 = vrcp.pop %v1238
        %v1394 = vmul.f32 1.0, %v1393
        %v1395 = vrcp.pop %v1239
        %v1396 = vmul.f32 1.0, %v1395
        %v1397 = vrcp.pop %v1240
        %v1398 = vmul.f32 1.0, %v1397
        %v1399 = vrcp.pop %v1241
        %v1400 = vmul.f32 1.0, %v1399
        %v1401 = vrcp.pop %v1242
        %v1402 = vmul.f32 1.0, %v1401
        %v1403 = vrcp.pop %v1243
        %v1404 = vmul.f32 1.0, %v1403
        %v1405 = vrcp.pop %v1244
        %v1406 = vmul.f32 1.0, %v1405
        %v1407 = vrcp.pop %v1245
        %v1408 = vmul.f32 1.0, %v1407
        %v1409 = vrcp.pop %v1246
        %v1410 = vmul.f32 1.0, %v1409
        %v1411 = vrcp.pop %v1247
        %v1412 = vmul.f32 1.0, %v1411
        %v1413 = vrcp.pop %v1248
        %v1414 = vmul.f32 1.0, %v1413
        %v1415 = vrcp.pop %v1249
        %v1416 = vmul.f32 1.0, %v1415
        %v1417 = vrcp.pop %v1250
        %v1418 = vmul.f32 1.0, %v1417
        %v1419 = vrcp.pop %v1251
        %v1420 = vmul.f32 1.0, %v1419
        %v1421 = vrcp.pop %v1252
        %v1422 = vmul.f32 1.0, %v1421
        %v1423 = vrcp.pop %v1253
        %v1424 = vmul.f32 1.0, %v1423
        %v1425 = vrcp.pop %v1254
        %v1426 = vmul.f32 1.0, %v1425
        %v1427 = vrcp.pop %v1255
        %v1428 = vmul.f32 1.0, %v1427
        %v1429 = vrcp.pop %v1256
        %v1430 = vmul.f32 1.0, %v1429
        %v1431 = vrcp.pop %v1257
        %v1432 = vmul.f32 1.0, %v1431
        %v1433 = vrcp.pop %v1258
        %v1434 = vmul.f32 1.0, %v1433
        %v1435 = vrcp.pop %v1259
        %v1436 = vmul.f32 1.0, %v1435
        %v1437 = vrcp.pop %v1260
        %v1438 = vmul.f32 1.0, %v1437
        %v1439 = vrcp.pop %v1261
        %v1440 = vmul.f32 1.0, %v1439
        %v1441 = vrcp.pop %v1262
        %v1442 = vmul.f32 1.0, %v1441
        %v1443 = vrcp.pop %v1263
        %v1444 = vmul.f32 1.0, %v1443
        %v1445 = vrcp.pop %v1264
        %v1446 = vmul.f32 1.0, %v1445
        %v1447 = vrcp.pop %v1265
        %v1448 = vmul.f32 1.0, %v1447
        %v1449 = vrcp.pop %v1266
        %v1450 = vmul.f32 1.0, %v1449
        %v1451 = vrcp.pop %v1267
        %v1452 = vmul.f32 1.0, %v1451
        %v1453 = vrcp.pop %v1268
        %v1454 = vmul.f32 1.0, %v1453
        %v1455 = vrcp.pop %v1269
        %v1456 = vmul.f32 1.0, %v1455
        %v1457 = vrcp.pop %v1270
        %v1458 = vmul.f32 1.0, %v1457
        %v1459 = vrcp.pop %v1271
        %v1460 = vmul.f32 1.0, %v1459
        %v1461 = vrcp.pop %v1272
        %v1462 = vmul.f32 1.0, %v1461
        %v1463 = vrcp.pop %v1273
        %v1464 = vmul.f32 1.0, %v1463
        %v1465 = vrcp.pop %v1274
        %v1466 = vmul.f32 1.0, %v1465
        %v1467 = vmul.f32 %v509, %v1276
        %v1468 = vmul.f32 %v512, %v1278
        %v1469 = vmul.f32 %v517, %v1280
        %v1470 = vmul.f32 %v520, %v1282
        %v1471 = vmul.f32 %v525, %v1284
        %v1472 = vmul.f32 %v528, %v1286
        %v1473 = vmul.f32 %v533, %v1288
        %v1474 = vmul.f32 %v536, %v1290
        %v1475 = vmul.f32 %v541, %v1292
        %v1476 = vmul.f32 %v544, %v1294
        %v1477 = vmul.f32 %v549, %v1296
        %v1478 = vmul.f32 %v552, %v1298
        %v1479 = vmul.f32 %v557, %v1300
        %v1480 = vmul.f32 %v560, %v1302
        %v1481 = vmul.f32 %v565, %v1304
        %v1482 = vmul.f32 %v568, %v1306
        %v1483 = vmul.f32 %v573, %v1308
        %v1484 = vmul.f32 %v576, %v1310
        %v1485 = vmul.f32 %v581, %v1312
        %v1486 = vmul.f32 %v584, %v1314
        %v1487 = vmul.f32 %v589, %v1316
        %v1488 = vmul.f32 %v592, %v1318
        %v1489 = vmul.f32 %v597, %v1320
        %v1490 = vmul.f32 %v600, %v1322
        %v1491 = vmul.f32 %v605, %v1324
        %v1492 = vmul.f32 %v608, %v1326
        %v1493 = vmul.f32 %v613, %v1328
        %v1494 = vmul.f32 %v616, %v1330
        %v1495 = vmul.f32 %v621, %v1332
        %v1496 = vmul.f32 %v624, %v1334
        %v1497 = vmul.f32 %v629, %v1336
        %v1498 = vmul.f32 %v632, %v1338
        %v1499 = vmul.f32 %v637, %v1340
        %v1500 = vmul.f32 %v640, %v1342
        %v1501 = vmul.f32 %v645, %v1344
        %v1502 = vmul.f32 %v648, %v1346
        %v1503 = vmul.f32 %v653, %v1348
        %v1504 = vmul.f32 %v656, %v1350
        %v1505 = vmul.f32 %v661, %v1352
        %v1506 = vmul.f32 %v664, %v1354
        %v1507 = vmul.f32 %v669, %v1356
        %v1508 = vmul.f32 %v672, %v1358
        %v1509 = vmul.f32 %v677, %v1360
        %v1510 = vmul.f32 %v680, %v1362
        %v1511 = vmul.f32 %v685, %v1364
        %v1512 = vmul.f32 %v688, %v1366
        %v1513 = vmul.f32 %v693, %v1368
        %v1514 = vmul.f32 %v696, %v1370
        %v1515 = vmul.f32 %v701, %v1372
        %v1516 = vmul.f32 %v704, %v1374
        %v1517 = vmul.f32 %v709, %v1376
        %v1518 = vmul.f32 %v712, %v1378
        %v1519 = vmul.f32 %v717, %v1380
        %v1520 = vmul.f32 %v720, %v1382
        %v1521 = vmul.f32 %v725, %v1384
        %v1522 = vmul.f32 %v728, %v1386
        %v1523 = vmul.f32 %v733, %v1388
        %v1524 = vmul.f32 %v736, %v1390
        %v1525 = vmul.f32 %v741, %v1392
        %v1526 = vmul.f32 %v744, %v1394
        %v1527 = vmul.f32 %v749, %v1396
        %v1528 = vmul.f32 %v752, %v1398
        %v1529 = vmul.f32 %v757, %v1400
        %v1530 = vmul.f32 %v760, %v1402
        %v1531 = vmul.f32 %v765, %v1404
        %v1532 = vmul.f32 %v768, %v1406
        %v1533 = vmul.f32 %v773, %v1408
        %v1534 = vmul.f32 %v776, %v1410
        %v1535 = vmul.f32 %v781, %v1412
        %v1536 = vmul.f32 %v784, %v1414
        %v1537 = vmul.f32 %v789, %v1416
        %v1538 = vmul.f32 %v792, %v1418
        %v1539 = vmul.f32 %v797, %v1420
        %v1540 = vmul.f32 %v800, %v1422
        %v1541 = vmul.f32 %v805, %v1424
        %v1542 = vmul.f32 %v808, %v1426
        %v1543 = vmul.f32 %v813, %v1428
        %v1544 = vmul.f32 %v816, %v1430
        %v1545 = vmul.f32 %v821, %v1432
        %v1546 = vmul.f32 %v824, %v1434
        %v1547 = vmul.f32 %v829, %v1436
        %v1548 = vmul.f32 %v832, %v1438
        %v1549 = vmul.f32 %v837, %v1440
        %v1550 = vmul.f32 %v840, %v1442
        %v1551 = vmul.f32 %v845, %v1444
        %v1552 = vmul.f32 %v848, %v1446
        %v1553 = vmul.f32 %v853, %v1448
        %v1554 = vmul.f32 %v856, %v1450
        %v1555 = vmul.f32 %v861, %v1452
        %v1556 = vmul.f32 %v864, %v1454
        %v1557 = vmul.f32 %v869, %v1456
        %v1558 = vmul.f32 %v872, %v1458
        %v1559 = vmul.f32 %v877, %v1460
        %v1560 = vmul.f32 %v880, %v1462
        %v1561 = vmul.f32 %v885, %v1464
        %v1562 = vmul.f32 %v888, %v1466
        %v1563 = vpack.c.bf16 %v1468, %v1467
        %v1564 = vpack.c.bf16 %v1470, %v1469
        %v1565 = vpack.c.bf16 %v1472, %v1471
        %v1566 = vpack.c.bf16 %v1474, %v1473
        %v1567 = vpack.c.bf16 %v1476, %v1475
        %v1568 = vpack.c.bf16 %v1478, %v1477
        %v1569 = vpack.c.bf16 %v1480, %v1479
        %v1570 = vpack.c.bf16 %v1482, %v1481
        %v1571 = vpack.c.bf16 %v1484, %v1483
        %v1572 = vpack.c.bf16 %v1486, %v1485
        %v1573 = vpack.c.bf16 %v1488, %v1487
        %v1574 = vpack.c.bf16 %v1490, %v1489
        %v1575 = vpack.c.bf16 %v1492, %v1491
        %v1576 = vpack.c.bf16 %v1494, %v1493
        %v1577 = vpack.c.bf16 %v1496, %v1495
        %v1578 = vpack.c.bf16 %v1498, %v1497
        %v1579 = vpack.c.bf16 %v1500, %v1499
        %v1580 = vpack.c.bf16 %v1502, %v1501
        %v1581 = vpack.c.bf16 %v1504, %v1503
        %v1582 = vpack.c.bf16 %v1506, %v1505
        %v1583 = vpack.c.bf16 %v1508, %v1507
        %v1584 = vpack.c.bf16 %v1510, %v1509
        %v1585 = vpack.c.bf16 %v1512, %v1511
        %v1586 = vpack.c.bf16 %v1514, %v1513
        %v1587 = vpack.c.bf16 %v1516, %v1515
        %v1588 = vpack.c.bf16 %v1518, %v1517
        %v1589 = vpack.c.bf16 %v1520, %v1519
        %v1590 = vpack.c.bf16 %v1522, %v1521
        %v1591 = vpack.c.bf16 %v1524, %v1523
        %v1592 = vpack.c.bf16 %v1526, %v1525
        %v1593 = vpack.c.bf16 %v1528, %v1527
        %v1594 = vpack.c.bf16 %v1530, %v1529
        %v1595 = vpack.c.bf16 %v1532, %v1531
        %v1596 = vpack.c.bf16 %v1534, %v1533
        %v1597 = vpack.c.bf16 %v1536, %v1535
        %v1598 = vpack.c.bf16 %v1538, %v1537
        %v1599 = vpack.c.bf16 %v1540, %v1539
        %v1600 = vpack.c.bf16 %v1542, %v1541
        %v1601 = vpack.c.bf16 %v1544, %v1543
        %v1602 = vpack.c.bf16 %v1546, %v1545
        %v1603 = vpack.c.bf16 %v1548, %v1547
        %v1604 = vpack.c.bf16 %v1550, %v1549
        %v1605 = vpack.c.bf16 %v1552, %v1551
        %v1606 = vpack.c.bf16 %v1554, %v1553
        %v1607 = vpack.c.bf16 %v1556, %v1555
        %v1608 = vpack.c.bf16 %v1558, %v1557
        %v1609 = vpack.c.bf16 %v1560, %v1559
        %v1610 = vpack.c.bf16 %v1562, %v1561
        %v1659 = vunpack.c.l.b16 %v1563
        %v1660 = vunpack.c.h.b16 %v1563
        %v1661 = vunpack.c.l.b16 %v1564
        %v1662 = vunpack.c.h.b16 %v1564
        %v1663 = vunpack.c.l.b16 %v1565
        %v1664 = vunpack.c.h.b16 %v1565
        %v1665 = vunpack.c.l.b16 %v1566
        %v1666 = vunpack.c.h.b16 %v1566
        %v1667 = vunpack.c.l.b16 %v1567
        %v1668 = vunpack.c.h.b16 %v1567
        %v1669 = vunpack.c.l.b16 %v1568
        %v1670 = vunpack.c.h.b16 %v1568
        %v1671 = vunpack.c.l.b16 %v1569
        %v1672 = vunpack.c.h.b16 %v1569
        %v1673 = vunpack.c.l.b16 %v1570
        %v1674 = vunpack.c.h.b16 %v1570
        %v1675 = vunpack.c.l.b16 %v1571
        %v1676 = vunpack.c.h.b16 %v1571
        %v1677 = vunpack.c.l.b16 %v1572
        %v1678 = vunpack.c.h.b16 %v1572
        %v1679 = vunpack.c.l.b16 %v1573
        %v1680 = vunpack.c.h.b16 %v1573
        %v1681 = vunpack.c.l.b16 %v1574
        %v1682 = vunpack.c.h.b16 %v1574
        %v1683 = vunpack.c.l.b16 %v1575
        %v1684 = vunpack.c.h.b16 %v1575
        %v1685 = vunpack.c.l.b16 %v1576
        %v1686 = vunpack.c.h.b16 %v1576
        %v1687 = vunpack.c.l.b16 %v1577
        %v1688 = vunpack.c.h.b16 %v1577
        %v1689 = vunpack.c.l.b16 %v1578
        %v1690 = vunpack.c.h.b16 %v1578
        %v1691 = vunpack.c.l.b16 %v1579
        %v1692 = vunpack.c.h.b16 %v1579
        %v1693 = vunpack.c.l.b16 %v1580
        %v1694 = vunpack.c.h.b16 %v1580
        %v1695 = vunpack.c.l.b16 %v1581
        %v1696 = vunpack.c.h.b16 %v1581
        %v1697 = vunpack.c.l.b16 %v1582
        %v1698 = vunpack.c.h.b16 %v1582
        %v1699 = vunpack.c.l.b16 %v1583
        %v1700 = vunpack.c.h.b16 %v1583
        %v1701 = vunpack.c.l.b16 %v1584
        %v1702 = vunpack.c.h.b16 %v1584
        %v1703 = vunpack.c.l.b16 %v1585
        %v1704 = vunpack.c.h.b16 %v1585
        %v1705 = vunpack.c.l.b16 %v1586
        %v1706 = vunpack.c.h.b16 %v1586
        %v1707 = vunpack.c.l.b16 %v1587
        %v1708 = vunpack.c.h.b16 %v1587
        %v1709 = vunpack.c.l.b16 %v1588
        %v1710 = vunpack.c.h.b16 %v1588
        %v1711 = vunpack.c.l.b16 %v1589
        %v1712 = vunpack.c.h.b16 %v1589
        %v1713 = vunpack.c.l.b16 %v1590
        %v1714 = vunpack.c.h.b16 %v1590
        %v1715 = vunpack.c.l.b16 %v1591
        %v1716 = vunpack.c.h.b16 %v1591
        %v1717 = vunpack.c.l.b16 %v1592
        %v1718 = vunpack.c.h.b16 %v1592
        %v1719 = vunpack.c.l.b16 %v1593
        %v1720 = vunpack.c.h.b16 %v1593
        %v1721 = vunpack.c.l.b16 %v1594
        %v1722 = vunpack.c.h.b16 %v1594
        %v1723 = vunpack.c.l.b16 %v1595
        %v1724 = vunpack.c.h.b16 %v1595
        %v1725 = vunpack.c.l.b16 %v1596
        %v1726 = vunpack.c.h.b16 %v1596
        %v1727 = vunpack.c.l.b16 %v1597
        %v1728 = vunpack.c.h.b16 %v1597
        %v1729 = vunpack.c.l.b16 %v1598
        %v1730 = vunpack.c.h.b16 %v1598
        %v1731 = vunpack.c.l.b16 %v1599
        %v1732 = vunpack.c.h.b16 %v1599
        %v1733 = vunpack.c.l.b16 %v1600
        %v1734 = vunpack.c.h.b16 %v1600
        %v1735 = vunpack.c.l.b16 %v1601
        %v1736 = vunpack.c.h.b16 %v1601
        %v1737 = vunpack.c.l.b16 %v1602
        %v1738 = vunpack.c.h.b16 %v1602
        %v1739 = vunpack.c.l.b16 %v1603
        %v1740 = vunpack.c.h.b16 %v1603
        %v1741 = vunpack.c.l.b16 %v1604
        %v1742 = vunpack.c.h.b16 %v1604
        %v1743 = vunpack.c.l.b16 %v1605
        %v1744 = vunpack.c.h.b16 %v1605
        %v1745 = vunpack.c.l.b16 %v1606
        %v1746 = vunpack.c.h.b16 %v1606
        %v1747 = vunpack.c.l.b16 %v1607
        %v1748 = vunpack.c.h.b16 %v1607
        %v1749 = vunpack.c.l.b16 %v1608
        %v1750 = vunpack.c.h.b16 %v1608
        %v1751 = vunpack.c.l.b16 %v1609
        %v1752 = vunpack.c.h.b16 %v1609
        %v1753 = vunpack.c.l.b16 %v1610
        %v1754 = vunpack.c.h.b16 %v1610
        %v1755 = vpack.c.b16 %v1659, %v1659
        %v1756 = vpack.c.b16 %v1660, %v1660
        %v1757 = vpack.c.b16 %v1661, %v1661
        %v1758 = vpack.c.b16 %v1662, %v1662
        %v1759 = vpack.c.b16 %v1663, %v1663
        %v1760 = vpack.c.b16 %v1664, %v1664
        %v1761 = vpack.c.b16 %v1665, %v1665
        %v1762 = vpack.c.b16 %v1666, %v1666
        %v1763 = vpack.c.b16 %v1667, %v1667
        %v1764 = vpack.c.b16 %v1668, %v1668
        %v1765 = vpack.c.b16 %v1669, %v1669
        %v1766 = vpack.c.b16 %v1670, %v1670
        %v1767 = vpack.c.b16 %v1671, %v1671
        %v1768 = vpack.c.b16 %v1672, %v1672
        %v1769 = vpack.c.b16 %v1673, %v1673
        %v1770 = vpack.c.b16 %v1674, %v1674
        %v1771 = vpack.c.b16 %v1675, %v1675
        %v1772 = vpack.c.b16 %v1676, %v1676
        %v1773 = vpack.c.b16 %v1677, %v1677
        %v1774 = vpack.c.b16 %v1678, %v1678
        %v1775 = vpack.c.b16 %v1679, %v1679
        %v1776 = vpack.c.b16 %v1680, %v1680
        %v1777 = vpack.c.b16 %v1681, %v1681
        %v1778 = vpack.c.b16 %v1682, %v1682
        %v1779 = vpack.c.b16 %v1683, %v1683
        %v1780 = vpack.c.b16 %v1684, %v1684
        %v1781 = vpack.c.b16 %v1685, %v1685
        %v1782 = vpack.c.b16 %v1686, %v1686
        %v1783 = vpack.c.b16 %v1687, %v1687
        %v1784 = vpack.c.b16 %v1688, %v1688
        %v1785 = vpack.c.b16 %v1689, %v1689
        %v1786 = vpack.c.b16 %v1690, %v1690
        %v1787 = vpack.c.b16 %v1691, %v1691
        %v1788 = vpack.c.b16 %v1692, %v1692
        %v1789 = vpack.c.b16 %v1693, %v1693
        %v1790 = vpack.c.b16 %v1694, %v1694
        %v1791 = vpack.c.b16 %v1695, %v1695
        %v1792 = vpack.c.b16 %v1696, %v1696
        %v1793 = vpack.c.b16 %v1697, %v1697
        %v1794 = vpack.c.b16 %v1698, %v1698
        %v1795 = vpack.c.b16 %v1699, %v1699
        %v1796 = vpack.c.b16 %v1700, %v1700
        %v1797 = vpack.c.b16 %v1701, %v1701
        %v1798 = vpack.c.b16 %v1702, %v1702
        %v1799 = vpack.c.b16 %v1703, %v1703
        %v1800 = vpack.c.b16 %v1704, %v1704
        %v1801 = vpack.c.b16 %v1705, %v1705
        %v1802 = vpack.c.b16 %v1706, %v1706
        %v1803 = vpack.c.b16 %v1707, %v1707
        %v1804 = vpack.c.b16 %v1708, %v1708
        %v1805 = vpack.c.b16 %v1709, %v1709
        %v1806 = vpack.c.b16 %v1710, %v1710
        %v1807 = vpack.c.b16 %v1711, %v1711
        %v1808 = vpack.c.b16 %v1712, %v1712
        %v1809 = vpack.c.b16 %v1713, %v1713
        %v1810 = vpack.c.b16 %v1714, %v1714
        %v1811 = vpack.c.b16 %v1715, %v1715
        %v1812 = vpack.c.b16 %v1716, %v1716
        %v1813 = vpack.c.b16 %v1717, %v1717
        %v1814 = vpack.c.b16 %v1718, %v1718
        %v1815 = vpack.c.b16 %v1719, %v1719
        %v1816 = vpack.c.b16 %v1720, %v1720
        %v1817 = vpack.c.b16 %v1721, %v1721
        %v1818 = vpack.c.b16 %v1722, %v1722
        %v1819 = vpack.c.b16 %v1723, %v1723
        %v1820 = vpack.c.b16 %v1724, %v1724
        %v1821 = vpack.c.b16 %v1725, %v1725
        %v1822 = vpack.c.b16 %v1726, %v1726
        %v1823 = vpack.c.b16 %v1727, %v1727
        %v1824 = vpack.c.b16 %v1728, %v1728
        %v1825 = vpack.c.b16 %v1729, %v1729
        %v1826 = vpack.c.b16 %v1730, %v1730
        %v1827 = vpack.c.b16 %v1731, %v1731
        %v1828 = vpack.c.b16 %v1732, %v1732
        %v1829 = vpack.c.b16 %v1733, %v1733
        %v1830 = vpack.c.b16 %v1734, %v1734
        %v1831 = vpack.c.b16 %v1735, %v1735
        %v1832 = vpack.c.b16 %v1736, %v1736
        %v1833 = vpack.c.b16 %v1737, %v1737
        %v1834 = vpack.c.b16 %v1738, %v1738
        %v1835 = vpack.c.b16 %v1739, %v1739
        %v1836 = vpack.c.b16 %v1740, %v1740
        %v1837 = vpack.c.b16 %v1741, %v1741
        %v1838 = vpack.c.b16 %v1742, %v1742
        %v1839 = vpack.c.b16 %v1743, %v1743
        %v1840 = vpack.c.b16 %v1744, %v1744
        %v1841 = vpack.c.b16 %v1745, %v1745
        %v1842 = vpack.c.b16 %v1746, %v1746
        %v1843 = vpack.c.b16 %v1747, %v1747
        %v1844 = vpack.c.b16 %v1748, %v1748
        %v1845 = vpack.c.b16 %v1749, %v1749
        %v1846 = vpack.c.b16 %v1750, %v1750
        %v1847 = vpack.c.b16 %v1751, %v1751
        %v1848 = vpack.c.b16 %v1752, %v1752
        %v1849 = vpack.c.b16 %v1753, %v1753
        %v1850 = vpack.c.b16 %v1754, %v1754
        %1947 = vst [vmem:[%s164] sm:$0xf] %v1755
        %1948 = vst [vmem:[%s164 + $0x4] sm:$0xf] %v1756
        %1949 = vst [vmem:[%s164 + $0x8] sm:$0xf] %v1757
        %1950 = vst [vmem:[%s164 + $0xc] sm:$0xf] %v1758
        %1951 = vst [vmem:[%s164 + $0x10] sm:$0xf] %v1759
        %1952 = vst [vmem:[%s164 + $0x14] sm:$0xf] %v1760
        %1953 = vst [vmem:[%s164 + $0x18] sm:$0xf] %v1761
        %1954 = vst [vmem:[%s164 + $0x1c] sm:$0xf] %v1762
        %1955 = vst [vmem:[%s164 + $0x20] sm:$0xf] %v1763
        %1956 = vst [vmem:[%s164 + $0x24] sm:$0xf] %v1764
        %1957 = vst [vmem:[%s164 + $0x28] sm:$0xf] %v1765
        %1958 = vst [vmem:[%s164 + $0x2c] sm:$0xf] %v1766
        %1959 = vst [vmem:[%s164 + $0x30] sm:$0xf] %v1767
        %1960 = vst [vmem:[%s164 + $0x34] sm:$0xf] %v1768
        %1961 = vst [vmem:[%s164 + $0x38] sm:$0xf] %v1769
        %1962 = vst [vmem:[%s164 + $0x3c] sm:$0xf] %v1770
        %1963 = vst [vmem:[%s164 + $0x40] sm:$0xf] %v1771
        %1964 = vst [vmem:[%s164 + $0x44] sm:$0xf] %v1772
        %1965 = vst [vmem:[%s164 + $0x48] sm:$0xf] %v1773
        %1966 = vst [vmem:[%s164 + $0x4c] sm:$0xf] %v1774
        %1967 = vst [vmem:[%s164 + $0x50] sm:$0xf] %v1775
        %1968 = vst [vmem:[%s164 + $0x54] sm:$0xf] %v1776
        %1969 = vst [vmem:[%s164 + $0x58] sm:$0xf] %v1777
        %1970 = vst [vmem:[%s164 + $0x5c] sm:$0xf] %v1778
        %1971 = vst [vmem:[%s164 + $0x60] sm:$0xf] %v1779
        %1972 = vst [vmem:[%s164 + $0x64] sm:$0xf] %v1780
        %1973 = vst [vmem:[%s164 + $0x68] sm:$0xf] %v1781
        %1974 = vst [vmem:[%s164 + $0x6c] sm:$0xf] %v1782
        %1975 = vst [vmem:[%s164 + $0x70] sm:$0xf] %v1783
        %1976 = vst [vmem:[%s164 + $0x74] sm:$0xf] %v1784
        %1977 = vst [vmem:[%s164 + $0x78] sm:$0xf] %v1785
        %1978 = vst [vmem:[%s164 + $0x7c] sm:$0xf] %v1786
        %1979 = vst [vmem:[%s164 + $0x80] sm:$0xf] %v1787
        %1980 = vst [vmem:[%s164 + $0x84] sm:$0xf] %v1788
        %1981 = vst [vmem:[%s164 + $0x88] sm:$0xf] %v1789
        %1982 = vst [vmem:[%s164 + $0x8c] sm:$0xf] %v1790
        %1983 = vst [vmem:[%s164 + $0x90] sm:$0xf] %v1791
        %1984 = vst [vmem:[%s164 + $0x94] sm:$0xf] %v1792
        %1985 = vst [vmem:[%s164 + $0x98] sm:$0xf] %v1793
        %1986 = vst [vmem:[%s164 + $0x9c] sm:$0xf] %v1794
        %1987 = vst [vmem:[%s164 + $0xa0] sm:$0xf] %v1795
        %1988 = vst [vmem:[%s164 + $0xa4] sm:$0xf] %v1796
        %1989 = vst [vmem:[%s164 + $0xa8] sm:$0xf] %v1797
        %1990 = vst [vmem:[%s164 + $0xac] sm:$0xf] %v1798
        %1991 = vst [vmem:[%s164 + $0xb0] sm:$0xf] %v1799
        %1992 = vst [vmem:[%s164 + $0xb4] sm:$0xf] %v1800
        %1993 = vst [vmem:[%s164 + $0xb8] sm:$0xf] %v1801
        %1994 = vst [vmem:[%s164 + $0xbc] sm:$0xf] %v1802
        %1995 = vst [vmem:[%s164 + $0xc0] sm:$0xf] %v1803
        %1996 = vst [vmem:[%s164 + $0xc4] sm:$0xf] %v1804
        %1997 = vst [vmem:[%s164 + $0xc8] sm:$0xf] %v1805
        %1998 = vst [vmem:[%s164 + $0xcc] sm:$0xf] %v1806
        %1999 = vst [vmem:[%s164 + $0xd0] sm:$0xf] %v1807
        %2000 = vst [vmem:[%s164 + $0xd4] sm:$0xf] %v1808
        %2001 = vst [vmem:[%s164 + $0xd8] sm:$0xf] %v1809
        %2002 = vst [vmem:[%s164 + $0xdc] sm:$0xf] %v1810
        %2003 = vst [vmem:[%s164 + $0xe0] sm:$0xf] %v1811
        %2004 = vst [vmem:[%s164 + $0xe4] sm:$0xf] %v1812
        %2005 = vst [vmem:[%s164 + $0xe8] sm:$0xf] %v1813
        %2006 = vst [vmem:[%s164 + $0xec] sm:$0xf] %v1814
        %2007 = vst [vmem:[%s164 + $0xf0] sm:$0xf] %v1815
        %2008 = vst [vmem:[%s164 + $0xf4] sm:$0xf] %v1816
        %2009 = vst [vmem:[%s164 + $0xf8] sm:$0xf] %v1817
        %2010 = vst [vmem:[%s164 + $0xfc] sm:$0xf] %v1818
        %2011 = vst [vmem:[%s164 + $0x100] sm:$0xf] %v1819
        %2012 = vst [vmem:[%s164 + $0x104] sm:$0xf] %v1820
        %2013 = vst [vmem:[%s164 + $0x108] sm:$0xf] %v1821
        %2014 = vst [vmem:[%s164 + $0x10c] sm:$0xf] %v1822
        %2015 = vst [vmem:[%s164 + $0x110] sm:$0xf] %v1823
        %2016 = vst [vmem:[%s164 + $0x114] sm:$0xf] %v1824
        %2017 = vst [vmem:[%s164 + $0x118] sm:$0xf] %v1825
        %2018 = vst [vmem:[%s164 + $0x11c] sm:$0xf] %v1826
        %2019 = vst [vmem:[%s164 + $0x120] sm:$0xf] %v1827
        %2020 = vst [vmem:[%s164 + $0x124] sm:$0xf] %v1828
        %2021 = vst [vmem:[%s164 + $0x128] sm:$0xf] %v1829
        %2022 = vst [vmem:[%s164 + $0x12c] sm:$0xf] %v1830
        %2023 = vst [vmem:[%s164 + $0x130] sm:$0xf] %v1831
        %2024 = vst [vmem:[%s164 + $0x134] sm:$0xf] %v1832
        %2025 = vst [vmem:[%s164 + $0x138] sm:$0xf] %v1833
        %2026 = vst [vmem:[%s164 + $0x13c] sm:$0xf] %v1834
        %2027 = vst [vmem:[%s164 + $0x140] sm:$0xf] %v1835
        %2028 = vst [vmem:[%s164 + $0x144] sm:$0xf] %v1836
        %2029 = vst [vmem:[%s164 + $0x148] sm:$0xf] %v1837
        %2030 = vst [vmem:[%s164 + $0x14c] sm:$0xf] %v1838
        %2031 = vst [vmem:[%s164 + $0x150] sm:$0xf] %v1839
        %2032 = vst [vmem:[%s164 + $0x154] sm:$0xf] %v1840
        %2033 = vst [vmem:[%s164 + $0x158] sm:$0xf] %v1841
        %2034 = vst [vmem:[%s164 + $0x15c] sm:$0xf] %v1842
        %2035 = vst [vmem:[%s164 + $0x160] sm:$0xf] %v1843
        %2036 = vst [vmem:[%s164 + $0x164] sm:$0xf] %v1844
        %2037 = vst [vmem:[%s164 + $0x168] sm:$0xf] %v1845
        %2038 = vst [vmem:[%s164 + $0x16c] sm:$0xf] %v1846
        %2039 = vst [vmem:[%s164 + $0x170] sm:$0xf] %v1847
        %2040 = vst [vmem:[%s164 + $0x174] sm:$0xf] %v1848
        %2041 = vst [vmem:[%s164 + $0x178] sm:$0xf] %v1849
        %2042 = vst [vmem:[%s164 + $0x17c] sm:$0xf] %v1850
        %s2043 = sand.u32 %s93, 1
        %s2044 = scalar_lea.sflag [#allocation3], %s2043
        %s2045 = sand.u32 %s93, 1
        %s2046 = smul.addr %s2045, 384
        %s2047 = scalar_lea.vmem [#allocation2], %s2046
        // Predicated region
        $region33: #{tpu_custom_call.1} parent=31 // pred_check
          %p2048 = pneg %p103
        $region34: #{tpu_custom_call.1} parent=31 // pred_check_branch
          %2050 = sbr.rel (%p2048) target = $region36
        $region35: #{tpu_custom_call.1} parent=31 // pred_region
          %s2051 = smul.u32 96, %s17
          %s2053 = ssub.s32 6144, 6144
          %2054 = vsyncadd %s2044, %s2053
          %s2055 = smul.addr %s2051, 64
          %s2056 = scalar_lea.hbm %s3, %s2055
          %s2057 = sshll.u32 %s2047, 4
          %s2058 = int_to_ptr.vmem [resolvable:$true] %s2057
          %2063 = dma.vmem_to_hbm [thread:$0]  %s2058, 6144, %s2056, %s2044, 64, 64, 4
        $region36: #{tpu_custom_call.1} parent=31 // pred_fallthru
          _
      $region32: #{tpu_custom_call.1} parent=5 // pred_fallthru
        _
      %p2064 = scmp.le.s32.totalorder 2, %s12
      // Predicated region
      $region37: #{tpu_custom_call.1} parent=5 // pred_check
        %p2065 = pneg %p2064
      $region38: #{tpu_custom_call.1} parent=5 // pred_check_branch
        %2067 = sbr.rel (%p2065) target = $region40
      $region39: #{tpu_custom_call.1} parent=5 // pred_region
        %s2068 = ssub.s32 %s12, 2
        // Predicated region
        $region41: #{tpu_custom_call.1} parent=39 // pred_check
          %p2069 = pneg %p109
        $region42: #{tpu_custom_call.1} parent=39 // pred_check_branch
          %2071 = sbr.rel (%p2069) target = $region44
        $region43: #{tpu_custom_call.1} parent=39 // pred_region
          %s2072 = sand.u32 %s94, 1
          %s2073 = scalar_lea.sflag [#allocation3], %s2072
          %s2074 = sand.u32 %s94, 1
          %s2075 = smul.addr %s2074, 384
          %s2076 = scalar_lea.vmem [#allocation2], %s2075
          %2077 = dma.done %s2073, 6144
        $region44: #{tpu_custom_call.1} parent=39 // pred_fallthru
          _
      $region40: #{tpu_custom_call.1} parent=5 // pred_fallthru
        _
    $region6: #{tpu_custom_call.1} parent=1 // loop_footer
      %s16 = sadd.s32 1, %s12
    $region7: #{tpu_custom_call.1} parent=1 // loop_footer_branch
      %11 = sbr.rel target = $region3
    $region8: #{tpu_custom_call.1} parent=1 // loop_exit
      _
    %2078 = vsyncpa [#allocation3], 1
    %s2079 = scalar_lea.sflag [#allocation3], 1
    %2080 = vsyncpa %s2079, 1

</llo_original>
